<compile_context>
chip_gen: v7x
topology: tpu7x:2x2x1
jax: 0.10.0
libtpu: 0.0.40
codegen_flags: <defaults>
</compile_context>

<pallas_src>
import functools

import jax
import jax.numpy as jnp
from jax.experimental import pallas as pl
from jax.experimental.pallas import tpu as pltpu

_LANE = 128


def _round_up(n, m):
    return ((n + m - 1) // m) * m


def _cdiv(a, b):
    return (a + b - 1) // b


def _sublane_granule(dtype):
    # 8 sublanes of 32-bit; sub-32-bit dtypes pack rows (bf16 -> 16, int8 -> 32).
    return 8 * max(1, 4 // jnp.dtype(dtype).itemsize)


def _decoder_kernel(x_ref, w1_ref, b1_ref, w2_ref, b2_ref, w3_ref, b3_ref,
                    o_ref, *, compute_dtype):
    cdt = compute_dtype
    x = x_ref[...].astype(cdt)

    # Layer 1: Linear + LeakyReLU(0.2); f32 accumulation on the MXU.
    h = jnp.dot(x, w1_ref[...], preferred_element_type=jnp.float32)
    h = h + b1_ref[...]
    h = jnp.maximum(h, 0.2 * h)          # LeakyReLU, 2 VALU ops

    # Layer 2: Linear + LeakyReLU(0.2).
    h = jnp.dot(h.astype(cdt), w2_ref[...], preferred_element_type=jnp.float32)
    h = h + b2_ref[...]
    h = jnp.maximum(h, 0.2 * h)

    # Output layer + sigmoid: exp -> EUP, approx reciprocal -> EUP (free slot).
    y = jnp.dot(h.astype(cdt), w3_ref[...], preferred_element_type=jnp.float32)
    y = y + b3_ref[...]
    o_ref[...] = pl.reciprocal(1.0 + jnp.exp(-y), approx=True).astype(o_ref.dtype)


def prepare_decoder_params(w1, b1, w2, b2, w3, b3, *, compute_dtype=jnp.bfloat16):
    """One-time prep of nn.Linear params: transpose to (in, out), lane-pad, cast.

    w1: (hidden, latent), w2: (hidden, hidden), w3: (output, hidden); b*: (out_features,).
    Zero padding is inert: pad weight cols + zero biases give 0 pre-activation,
    LeakyReLU(0)=0 propagates zeros through the hidden layers; padded output
    lanes are sliced away by the caller.
    """
    hidden, latent = w1.shape
    out_dim = w3.shape[0]
    assert w2.shape == (hidden, hidden)
    assert w3.shape == (out_dim, hidden)
    assert b1.shape == (hidden,) and b2.shape == (hidden,) and b3.shape == (out_dim,)

    hidden_p = _round_up(hidden, _LANE)
    out_p = _round_up(out_dim, _LANE)
    cdt = compute_dtype
    f32 = jnp.float32

    w1p = jnp.zeros((latent, hidden_p), cdt).at[:, :hidden].set(w1.T.astype(cdt))
    w2p = jnp.zeros((hidden_p, hidden_p), cdt).at[:hidden, :hidden].set(w2.T.astype(cdt))
    w3p = jnp.zeros((hidden_p, out_p), cdt).at[:hidden, :out_dim].set(w3.T.astype(cdt))
    b1p = jnp.zeros((1, hidden_p), f32).at[0, :hidden].set(b1.astype(f32))
    b2p = jnp.zeros((1, hidden_p), f32).at[0, :hidden].set(b2.astype(f32))
    b3p = jnp.zeros((1, out_p), f32).at[0, :out_dim].set(b3.astype(f32))

    return dict(w1=w1p, b1=b1p, w2=w2p, b2=b2p, w3=w3p, b3=b3p,
                latent=latent, hidden=hidden, out_dim=out_dim,
                compute_dtype=cdt)


def decoder_apply(params, x, *, block_batch=512, out_dtype=jnp.float32):
    """Run the fused 3-layer decoder on x: (B, latent) -> (B, out_dim)."""
    B, latent = x.shape
    assert latent == params["latent"], "latent dim mismatch"
    cdt = params["compute_dtype"]
    hidden_p = params["w2"].shape[0]
    out_p = params["w3"].shape[1]
    out_dim = params["out_dim"]

    # ---- batch tile: big (fills MXU rows), but >=2 grid steps when possible
    # so dimension_semantics=("parallel",) can use both v7x TensorCores. ----
    sub = max(_sublane_granule(x.dtype), _sublane_granule(out_dtype))
    if B > block_batch:
        tm = _round_up(block_batch, sub)
    else:
        tm = max(sub, _round_up(_cdiv(B, 2), sub))
    grid = (_cdiv(B, tm),)   # ragged last block handled by Pallas (masked stores)

    # ---- VMEM budget: size from the actual buffers + headroom, capped at 75%
    # of physical VMEM (64 MiB on v7x, 128 MiB on v5e/v6e). ----
    isz = lambda dt: jnp.dtype(dt).itemsize
    w_bytes = (params["w1"].size + params["w2"].size + params["w3"].size) * isz(cdt)
    b_bytes = (params["b1"].size + params["b2"].size + params["b3"].size) * 4
    x_bytes = 2 * tm * latent * isz(x.dtype)          # double-buffered input tile
    o_bytes = 2 * tm * out_p * isz(out_dtype)         # double-buffered output tile
    act_bytes = tm * (2 * hidden_p + out_p) * 4       # f32 intermediates
    est = w_bytes + b_bytes + x_bytes + o_bytes + act_bytes
    try:
        phys_vmem = getattr(pltpu.get_tpu_info(), "vmem_capacity_bytes", None) or (128 << 20)
    except Exception:
        phys_vmem = 128 << 20
    vmem_limit = int(min(max(int(est * 1.5) + (4 << 20), 32 << 20),
                         int(phys_vmem * 0.75)))

    def build(weight_buffers):
        def resident(shape):
            # Constant index_map -> block never changes; single-buffer it to
            # avoid 2x VMEM for weights (matters on v7x's 64 MiB VMEM).
            if weight_buffers is None:
                return pl.BlockSpec(shape, lambda i: (0, 0))
            return pl.BlockSpec(shape, lambda i: (0, 0),
                                pipeline_mode=pl.Buffered(weight_buffers))

        return pl.pallas_call(
            functools.partial(_decoder_kernel, compute_dtype=cdt),
            out_shape=jax.ShapeDtypeStruct((B, out_p), out_dtype),
            grid_spec=pltpu.PrefetchScalarGridSpec(
                num_scalar_prefetch=0,
                grid=grid,
                in_specs=[
                    pl.BlockSpec((tm, latent), lambda i: (i, 0)),   # x batch tile
                    resident((latent, hidden_p)),                   # W1 (resident)
                    resident((1, hidden_p)),                        # b1
                    resident((hidden_p, hidden_p)),                 # W2
                    resident((1, hidden_p)),                        # b2
                    resident((hidden_p, out_p)),                    # W3
                    resident((1, out_p)),                           # b3
                ],
                out_specs=pl.BlockSpec((tm, out_p), lambda i: (i, 0)),
            ),
            compiler_params=pltpu.CompilerParams(
                dimension_semantics=("parallel",),
                vmem_limit_bytes=vmem_limit,
            ),
        )

    args = (x, params["w1"], params["b1"], params["w2"], params["b2"],
            params["w3"], params["b3"])
    try:
        out = build(1)(*args)
    except Exception:
        # Fallback if this JAX build rejects pipeline_mode / single buffering.
        out = build(None)(*args)

    if out_p != out_dim:
        out = out[:, :out_dim]   # lane-dim slice only; batch dim untouched
    return out


def decoder_forward(x, w1, b1, w2, b2, w3, b3, *,
                    compute_dtype=jnp.bfloat16, block_batch=512,
                    out_dtype=jnp.float32):
    """Convenience wrapper (prep + apply). For repeated calls, prep once."""
    params = prepare_decoder_params(w1, b1, w2, b2, w3, b3,
                                    compute_dtype=compute_dtype)
    return decoder_apply(params, x, block_batch=block_batch, out_dtype=out_dtype)


def _reference(x, w1, b1, w2, b2, w3, b3):
    h = x @ w1.T + b1
    h = jnp.where(h > 0, h, 0.2 * h)
    h = h @ w2.T + b2
    h = jnp.where(h > 0, h, 0.2 * h)
    return jax.nn.sigmoid(h @ w3.T + b3)


if __name__ == "__main__":
    latent_dim, hidden_dim, output_dim = 16, 32, 64
    batch = 16

    key = jax.random.PRNGKey(0)
    kx, k1, k2, k3, k4, k5, k6, kx2 = jax.random.split(key, 8)

    x = jax.random.normal(kx, (batch, latent_dim), dtype=jnp.float32)

    # nn.Linear-style params: weight (out_features, in_features), bias (out_features,)
    w1 = jax.random.normal(k1, (hidden_dim, latent_dim), jnp.float32) * 0.1
    b1 = jax.random.normal(k2, (hidden_dim,), jnp.float32) * 0.1
    w2 = jax.random.normal(k3, (hidden_dim, hidden_dim), jnp.float32) * 0.1
    b2 = jax.random.normal(k4, (hidden_dim,), jnp.float32) * 0.1
    w3 = jax.random.normal(k5, (output_dim, hidden_dim), jnp.float32) * 0.1
    b3 = jax.random.normal(k6, (output_dim,), jnp.float32) * 0.1
    raw_params = (w1, b1, w2, b2, w3, b3)

    ref = _reference(x, *raw_params)

    # 1) Default path: one-time bf16 param prep, multi-step "parallel" grid.
    prepped_bf16 = prepare_decoder_params(*raw_params)              # bf16 default
    out_bf16 = jax.block_until_ready(decoder_apply(prepped_bf16, x))
    assert out_bf16.shape == (batch, output_dim)
    assert jnp.allclose(out_bf16, ref, atol=3e-2, rtol=3e-2), "mismatch (bf16 default)"

    # 2) f32 compute path — tight semantics check (approx reciprocal => ~1e-3 tol).
    prepped_f32 = prepare_decoder_params(*raw_params, compute_dtype=jnp.float32)
    out_f32 = jax.block_until_ready(decoder_apply(prepped_f32, x))
    assert jnp.allclose(out_f32, ref, atol=5e-3, rtol=5e-3), "mismatch (f32)"

    # 3) Ragged batch, no batch padding, 2-step grid (v7x megacore path).
    big_batch = 300
    x_big = jax.random.normal(kx2, (big_batch, latent_dim), jnp.float32)
    out_big = jax.block_until_ready(decoder_apply(prepped_f32, x_big))
    ref_big = _reference(x_big, *raw_params)
    assert out_big.shape == (big_batch, output_dim)
    assert jnp.allclose(out_big, ref_big, atol=5e-3, rtol=5e-3), "mismatch (ragged)"

    # 4) bf16 output (v5e vst/writeback relief) — same prepped params reused.
    out_small = jax.block_until_ready(
        decoder_apply(prepped_bf16, x, out_dtype=jnp.bfloat16))
    assert out_small.dtype == jnp.bfloat16
    assert jnp.allclose(out_small.astype(jnp.float32), ref, atol=5e-2, rtol=5e-2), \
        "mismatch (bf16 out)"

    print("KERNEL_OK")
</pallas_src>

<mosaic_0001>
module attributes {stable_mosaic.version = 11 : i64} {
  func.func @_decoder_kernel(%arg0: i32, %arg1: memref<8x16xf32, #tpu.memory_space<vmem>>, %arg2: memref<16x128xbf16, #tpu.memory_space<vmem>>, %arg3: memref<1x128xf32, #tpu.memory_space<vmem>>, %arg4: memref<128x128xbf16, #tpu.memory_space<vmem>>, %arg5: memref<1x128xf32, #tpu.memory_space<vmem>>, %arg6: memref<128x128xbf16, #tpu.memory_space<vmem>>, %arg7: memref<1x128xf32, #tpu.memory_space<vmem>>, %arg8: memref<8x128xf32, #tpu.memory_space<vmem>>) attributes {dimension_semantics = [#tpu.dimension_semantics<parallel>], iteration_bounds = array<i64: 2>, scalar_prefetch = 0 : i64, scratch_operands = 0 : i64, tpu.core_type = #tpu.core_type<tc>, window_params = [{transform_indices = @transform_0, window_bounds = array<i64: 8, 16>}, {pipeline_mode = #tpu.pipeline_mode<synchronous>, transform_indices = @transform_1, window_bounds = array<i64: 16, 128>}, {pipeline_mode = #tpu.pipeline_mode<synchronous>, transform_indices = @transform_2, window_bounds = array<i64: 1, 128>}, {pipeline_mode = #tpu.pipeline_mode<synchronous>, transform_indices = @transform_3, window_bounds = array<i64: 128, 128>}, {pipeline_mode = #tpu.pipeline_mode<synchronous>, transform_indices = @transform_4, window_bounds = array<i64: 1, 128>}, {pipeline_mode = #tpu.pipeline_mode<synchronous>, transform_indices = @transform_5, window_bounds = array<i64: 128, 128>}, {pipeline_mode = #tpu.pipeline_mode<synchronous>, transform_indices = @transform_6, window_bounds = array<i64: 1, 128>}, {transform_indices = @transform_7, window_bounds = array<i64: 8, 128>}]} {
    %c0 = arith.constant 0 : index
    %c0_0 = arith.constant 0 : index
    %0 = vector.load %arg1[%c0, %c0_0] : memref<8x16xf32, #tpu.memory_space<vmem>>, vector<8x16xf32>
    %1 = arith.truncf %0 : vector<8x16xf32> to vector<8x16xbf16>
    %c0_1 = arith.constant 0 : index
    %c0_2 = arith.constant 0 : index
    %2 = vector.load %arg2[%c0_1, %c0_2] : memref<16x128xbf16, #tpu.memory_space<vmem>>, vector<16x128xbf16>
    %cst = arith.constant dense<0.000000e+00> : vector<8x128xf32>
    %3 = tpu.matmul %1, %2, %cst {dimension_numbers = #tpu.dot_dimension_numbers<[1], [0], [0], [1], [0, 0, 1, 1], [], []>} : vector<8x16xbf16>, vector<16x128xbf16>, vector<8x128xf32> -> vector<8x128xf32>
    %c0_3 = arith.constant 0 : index
    %c0_4 = arith.constant 0 : index
    %4 = vector.load %arg3[%c0_3, %c0_4] : memref<1x128xf32, #tpu.memory_space<vmem>>, vector<1x128xf32>
    %5 = vector.broadcast %4 : vector<1x128xf32> to vector<8x128xf32>
    %6 = arith.addf %3, %5 : vector<8x128xf32>
    %cst_5 = arith.constant 2.000000e-01 : f32
    %7 = vector.broadcast %cst_5 : f32 to vector<8x128xf32>
    %8 = arith.mulf %7, %6 : vector<8x128xf32>
    %9 = arith.maximumf %6, %8 : vector<8x128xf32>
    %10 = arith.truncf %9 : vector<8x128xf32> to vector<8x128xbf16>
    %c0_6 = arith.constant 0 : index
    %c0_7 = arith.constant 0 : index
    %11 = vector.load %arg4[%c0_6, %c0_7] : memref<128x128xbf16, #tpu.memory_space<vmem>>, vector<128x128xbf16>
    %cst_8 = arith.constant dense<0.000000e+00> : vector<8x128xf32>
    %12 = tpu.matmul %10, %11, %cst_8 {dimension_numbers = #tpu.dot_dimension_numbers<[1], [0], [0], [1], [0, 0, 1, 1], [], []>} : vector<8x128xbf16>, vector<128x128xbf16>, vector<8x128xf32> -> vector<8x128xf32>
    %c0_9 = arith.constant 0 : index
    %c0_10 = arith.constant 0 : index
    %13 = vector.load %arg5[%c0_9, %c0_10] : memref<1x128xf32, #tpu.memory_space<vmem>>, vector<1x128xf32>
    %14 = vector.broadcast %13 : vector<1x128xf32> to vector<8x128xf32>
    %15 = arith.addf %12, %14 : vector<8x128xf32>
    %cst_11 = arith.constant 2.000000e-01 : f32
    %16 = vector.broadcast %cst_11 : f32 to vector<8x128xf32>
    %17 = arith.mulf %16, %15 : vector<8x128xf32>
    %18 = arith.maximumf %15, %17 : vector<8x128xf32>
    %19 = arith.truncf %18 : vector<8x128xf32> to vector<8x128xbf16>
    %c0_12 = arith.constant 0 : index
    %c0_13 = arith.constant 0 : index
    %20 = vector.load %arg6[%c0_12, %c0_13] : memref<128x128xbf16, #tpu.memory_space<vmem>>, vector<128x128xbf16>
    %cst_14 = arith.constant dense<0.000000e+00> : vector<8x128xf32>
    %21 = tpu.matmul %19, %20, %cst_14 {dimension_numbers = #tpu.dot_dimension_numbers<[1], [0], [0], [1], [0, 0, 1, 1], [], []>} : vector<8x128xbf16>, vector<128x128xbf16>, vector<8x128xf32> -> vector<8x128xf32>
    %c0_15 = arith.constant 0 : index
    %c0_16 = arith.constant 0 : index
    %22 = vector.load %arg7[%c0_15, %c0_16] : memref<1x128xf32, #tpu.memory_space<vmem>>, vector<1x128xf32>
    %23 = vector.broadcast %22 : vector<1x128xf32> to vector<8x128xf32>
    %24 = arith.addf %21, %23 : vector<8x128xf32>
    %cst_17 = arith.constant 0.000000e+00 : f32
    %25 = vector.broadcast %cst_17 : f32 to vector<8x128xf32>
    %26 = arith.subf %25, %24 : vector<8x128xf32>
    %27 = math.exp %26 : vector<8x128xf32>
    %cst_18 = arith.constant 1.000000e+00 : f32
    %28 = vector.broadcast %cst_18 : f32 to vector<8x128xf32>
    %29 = arith.addf %28, %27 : vector<8x128xf32>
    %30 = tpu.reciprocal %29 {approx = true} : vector<8x128xf32> -> vector<8x128xf32>
    %c0_19 = arith.constant 0 : index
    %c0_20 = arith.constant 0 : index
    %31 = vector.load %arg8[%c0_19, %c0_20] : memref<8x128xf32, #tpu.memory_space<vmem>>, vector<8x128xf32>
    tpu.vector_store %arg8[%c0_19, %c0_20], %30 {strides = array<i32>} : memref<8x128xf32, #tpu.memory_space<vmem>>, vector<8x128xf32>,
    return
  }
  func.func @transform_0(%arg0: i32) -> (i32, i32) {
    %c0_i32 = arith.constant 0 : i32
    %c0_i32_0 = arith.constant 0 : i32
    return %arg0, %c0_i32 : i32, i32
  }
  func.func @transform_1(%arg0: i32) -> (i32, i32) {
    %c0_i32 = arith.constant 0 : i32
    %c0_i32_0 = arith.constant 0 : i32
    %c0_i32_1 = arith.constant 0 : i32
    return %c0_i32, %c0_i32_0 : i32, i32
  }
  func.func @transform_2(%arg0: i32) -> (i32, i32) {
    %c0_i32 = arith.constant 0 : i32
    %c0_i32_0 = arith.constant 0 : i32
    %c0_i32_1 = arith.constant 0 : i32
    return %c0_i32, %c0_i32_0 : i32, i32
  }
  func.func @transform_3(%arg0: i32) -> (i32, i32) {
    %c0_i32 = arith.constant 0 : i32
    %c0_i32_0 = arith.constant 0 : i32
    %c0_i32_1 = arith.constant 0 : i32
    return %c0_i32, %c0_i32_0 : i32, i32
  }
  func.func @transform_4(%arg0: i32) -> (i32, i32) {
    %c0_i32 = arith.constant 0 : i32
    %c0_i32_0 = arith.constant 0 : i32
    %c0_i32_1 = arith.constant 0 : i32
    return %c0_i32, %c0_i32_0 : i32, i32
  }
  func.func @transform_5(%arg0: i32) -> (i32, i32) {
    %c0_i32 = arith.constant 0 : i32
    %c0_i32_0 = arith.constant 0 : i32
    %c0_i32_1 = arith.constant 0 : i32
    return %c0_i32, %c0_i32_0 : i32, i32
  }
  func.func @transform_6(%arg0: i32) -> (i32, i32) {
    %c0_i32 = arith.constant 0 : i32
    %c0_i32_0 = arith.constant 0 : i32
    %c0_i32_1 = arith.constant 0 : i32
    return %c0_i32, %c0_i32_0 : i32, i32
  }
  func.func @transform_7(%arg0: i32) -> (i32, i32) {
    %c0_i32 = arith.constant 0 : i32
    %c0_i32_0 = arith.constant 0 : i32
    return %arg0, %c0_i32 : i32, i32
  }
}

module attributes {stable_mosaic.version = 11 : i64} {
  func.func @_decoder_kernel(%arg0: i32, %arg1: memref<8x16xf32, #tpu.memory_space<vmem>>, %arg2: memref<16x128xbf16, #tpu.memory_space<vmem>>, %arg3: memref<1x128xf32, #tpu.memory_space<vmem>>, %arg4: memref<128x128xbf16, #tpu.memory_space<vmem>>, %arg5: memref<1x128xf32, #tpu.memory_space<vmem>>, %arg6: memref<128x128xbf16, #tpu.memory_space<vmem>>, %arg7: memref<1x128xf32, #tpu.memory_space<vmem>>, %arg8: memref<8x128xf32, #tpu.memory_space<vmem>>) attributes {dimension_semantics = [#tpu.dimension_semantics<parallel>], iteration_bounds = array<i64: 2>, scalar_prefetch = 0 : i64, scratch_operands = 0 : i64, tpu.core_type = #tpu.core_type<tc>, window_params = [{transform_indices = @transform_0, window_bounds = array<i64: 8, 16>}, {pipeline_mode = #tpu.pipeline_mode<synchronous>, transform_indices = @transform_1, window_bounds = array<i64: 16, 128>}, {pipeline_mode = #tpu.pipeline_mode<synchronous>, transform_indices = @transform_2, window_bounds = array<i64: 1, 128>}, {pipeline_mode = #tpu.pipeline_mode<synchronous>, transform_indices = @transform_3, window_bounds = array<i64: 128, 128>}, {pipeline_mode = #tpu.pipeline_mode<synchronous>, transform_indices = @transform_4, window_bounds = array<i64: 1, 128>}, {pipeline_mode = #tpu.pipeline_mode<synchronous>, transform_indices = @transform_5, window_bounds = array<i64: 128, 128>}, {pipeline_mode = #tpu.pipeline_mode<synchronous>, transform_indices = @transform_6, window_bounds = array<i64: 1, 128>}, {transform_indices = @transform_7, window_bounds = array<i64: 8, 128>}]} {
    %c0 = arith.constant 0 : index
    %c0_0 = arith.constant 0 : index
    %0 = vector.load %arg1[%c0, %c0_0] : memref<8x16xf32, #tpu.memory_space<vmem>>, vector<8x16xf32>
    %1 = arith.truncf %0 : vector<8x16xf32> to vector<8x16xbf16>
    %c0_1 = arith.constant 0 : index
    %c0_2 = arith.constant 0 : index
    %2 = vector.load %arg2[%c0_1, %c0_2] : memref<16x128xbf16, #tpu.memory_space<vmem>>, vector<16x128xbf16>
    %cst = arith.constant dense<0.000000e+00> : vector<8x128xf32>
    %3 = tpu.matmul %1, %2, %cst {dimension_numbers = #tpu.dot_dimension_numbers<[1], [0], [0], [1], [0, 0, 1, 1], [], []>} : vector<8x16xbf16>, vector<16x128xbf16>, vector<8x128xf32> -> vector<8x128xf32>
    %c0_3 = arith.constant 0 : index
    %c0_4 = arith.constant 0 : index
    %4 = vector.load %arg3[%c0_3, %c0_4] : memref<1x128xf32, #tpu.memory_space<vmem>>, vector<1x128xf32>
    %5 = vector.broadcast %4 : vector<1x128xf32> to vector<8x128xf32>
    %6 = arith.addf %3, %5 : vector<8x128xf32>
    %cst_5 = arith.constant 2.000000e-01 : f32
    %7 = vector.broadcast %cst_5 : f32 to vector<8x128xf32>
    %8 = arith.mulf %7, %6 : vector<8x128xf32>
    %9 = arith.maximumf %6, %8 : vector<8x128xf32>
    %10 = arith.truncf %9 : vector<8x128xf32> to vector<8x128xbf16>
    %c0_6 = arith.constant 0 : index
    %c0_7 = arith.constant 0 : index
    %11 = vector.load %arg4[%c0_6, %c0_7] : memref<128x128xbf16, #tpu.memory_space<vmem>>, vector<128x128xbf16>
    %cst_8 = arith.constant dense<0.000000e+00> : vector<8x128xf32>
    %12 = tpu.matmul %10, %11, %cst_8 {dimension_numbers = #tpu.dot_dimension_numbers<[1], [0], [0], [1], [0, 0, 1, 1], [], []>} : vector<8x128xbf16>, vector<128x128xbf16>, vector<8x128xf32> -> vector<8x128xf32>
    %c0_9 = arith.constant 0 : index
    %c0_10 = arith.constant 0 : index
    %13 = vector.load %arg5[%c0_9, %c0_10] : memref<1x128xf32, #tpu.memory_space<vmem>>, vector<1x128xf32>
    %14 = vector.broadcast %13 : vector<1x128xf32> to vector<8x128xf32>
    %15 = arith.addf %12, %14 : vector<8x128xf32>
    %cst_11 = arith.constant 2.000000e-01 : f32
    %16 = vector.broadcast %cst_11 : f32 to vector<8x128xf32>
    %17 = arith.mulf %16, %15 : vector<8x128xf32>
    %18 = arith.maximumf %15, %17 : vector<8x128xf32>
    %19 = arith.truncf %18 : vector<8x128xf32> to vector<8x128xbf16>
    %c0_12 = arith.constant 0 : index
    %c0_13 = arith.constant 0 : index
    %20 = vector.load %arg6[%c0_12, %c0_13] : memref<128x128xbf16, #tpu.memory_space<vmem>>, vector<128x128xbf16>
    %cst_14 = arith.constant dense<0.000000e+00> : vector<8x128xf32>
    %21 = tpu.matmul %19, %20, %cst_14 {dimension_numbers = #tpu.dot_dimension_numbers<[1], [0], [0], [1], [0, 0, 1, 1], [], []>} : vector<8x128xbf16>, vector<128x128xbf16>, vector<8x128xf32> -> vector<8x128xf32>
    %c0_15 = arith.constant 0 : index
    %c0_16 = arith.constant 0 : index
    %22 = vector.load %arg7[%c0_15, %c0_16] : memref<1x128xf32, #tpu.memory_space<vmem>>, vector<1x128xf32>
    %23 = vector.broadcast %22 : vector<1x128xf32> to vector<8x128xf32>
    %24 = arith.addf %21, %23 : vector<8x128xf32>
    %cst_17 = arith.constant 0.000000e+00 : f32
    %25 = vector.broadcast %cst_17 : f32 to vector<8x128xf32>
    %26 = arith.subf %25, %24 : vector<8x128xf32>
    %27 = math.exp %26 : vector<8x128xf32>
    %cst_18 = arith.constant 1.000000e+00 : f32
    %28 = vector.broadcast %cst_18 : f32 to vector<8x128xf32>
    %29 = arith.addf %28, %27 : vector<8x128xf32>
    %30 = tpu.reciprocal %29 {approx = true} : vector<8x128xf32> -> vector<8x128xf32>
    %c0_19 = arith.constant 0 : index
    %c0_20 = arith.constant 0 : index
    %31 = vector.load %arg8[%c0_19, %c0_20] : memref<8x128xf32, #tpu.memory_space<vmem>>, vector<8x128xf32>
    tpu.vector_store %arg8[%c0_19, %c0_20], %30 {strides = array<i32>} : memref<8x128xf32, #tpu.memory_space<vmem>>, vector<8x128xf32>,
    return
  }
  func.func @transform_0(%arg0: i32) -> (i32, i32) {
    %c0_i32 = arith.constant 0 : i32
    %c0_i32_0 = arith.constant 0 : i32
    return %arg0, %c0_i32 : i32, i32
  }
  func.func @transform_1(%arg0: i32) -> (i32, i32) {
    %c0_i32 = arith.constant 0 : i32
    %c0_i32_0 = arith.constant 0 : i32
    %c0_i32_1 = arith.constant 0 : i32
    return %c0_i32, %c0_i32_0 : i32, i32
  }
  func.func @transform_2(%arg0: i32) -> (i32, i32) {
    %c0_i32 = arith.constant 0 : i32
    %c0_i32_0 = arith.constant 0 : i32
    %c0_i32_1 = arith.constant 0 : i32
    return %c0_i32, %c0_i32_0 : i32, i32
  }
  func.func @transform_3(%arg0: i32) -> (i32, i32) {
    %c0_i32 = arith.constant 0 : i32
    %c0_i32_0 = arith.constant 0 : i32
    %c0_i32_1 = arith.constant 0 : i32
    return %c0_i32, %c0_i32_0 : i32, i32
  }
  func.func @transform_4(%arg0: i32) -> (i32, i32) {
    %c0_i32 = arith.constant 0 : i32
    %c0_i32_0 = arith.constant 0 : i32
    %c0_i32_1 = arith.constant 0 : i32
    return %c0_i32, %c0_i32_0 : i32, i32
  }
  func.func @transform_5(%arg0: i32) -> (i32, i32) {
    %c0_i32 = arith.constant 0 : i32
    %c0_i32_0 = arith.constant 0 : i32
    %c0_i32_1 = arith.constant 0 : i32
    return %c0_i32, %c0_i32_0 : i32, i32
  }
  func.func @transform_6(%arg0: i32) -> (i32, i32) {
    %c0_i32 = arith.constant 0 : i32
    %c0_i32_0 = arith.constant 0 : i32
    %c0_i32_1 = arith.constant 0 : i32
    return %c0_i32, %c0_i32_0 : i32, i32
  }
  func.func @transform_7(%arg0: i32) -> (i32, i32) {
    %c0_i32 = arith.constant 0 : i32
    %c0_i32_0 = arith.constant 0 : i32
    return %arg0, %c0_i32 : i32, i32
  }
}

</mosaic_0001>

<llo_original>
// kernel: tpu_custom_call.1
$region0: #{tpu_custom_call.1}
  #allocation0 [shape = 'u32[]', space=smem, size = 0x4, offset = 0x4, fixed_abs, tag = 'smem constant byte address 0x4 - core index']
  #allocation1 [shape = 'u32[144,128]{1,0:T(1,128)}', space=vmem, size = 0x12000, scoped, tag = 'internal scratch']
  %s0 = inlined_call_operand.hbm [shape: f32[16,16], index: 0, kind: input, shape index: {}]
  %s1 = inlined_call_operand.hbm [shape: bf16[16,128], index: 1, kind: input, shape index: {}]
  %s2 = inlined_call_operand.vmem [shape: f32[1,128], index: 2, kind: input, shape index: {}]
  %s3 = inlined_call_operand.hbm [shape: bf16[128,128], index: 3, kind: input, shape index: {}]
  %s4 = inlined_call_operand.vmem [shape: f32[1,128], index: 4, kind: input, shape index: {}]
  %s5 = inlined_call_operand.hbm [shape: bf16[128,128], index: 5, kind: input, shape index: {}]
  %s6 = inlined_call_operand.vmem [shape: f32[1,128], index: 6, kind: input, shape index: {}]
  %s7 = inlined_call_operand.hbm [shape: f32[16,128], index: 7, kind: output, shape index: {}]
  %s8 = sld [smem:[#allocation0]]
  $region77: #{tpu_custom_call.1} parent=0
    _
  %s10 = ssub.s32 1, %s8
  %s11 = scalar_select 0, %s10, %s8
  $region1: #{tpu_custom_call.1} parent=0
    #allocation2 [shape = 'u8[8192]{0}', space=vmem, size = 0x2000, scoped, tag = 'input window, operand 0']
    #allocation3 [shape = 's32[2]{0}', space=sflag, size = 0x8, scoped, tag = 'scoped memory for tpu_custom_call.1']
    #allocation4 [shape = 's32[2]{0}', space=sflag, size = 0x8, scoped, tag = 'scoped memory for tpu_custom_call.1']
    #allocation5 [shape = 'u8[4096]{0}', space=vmem, size = 0x1000, scoped, tag = 'input window, operand 1, single buffered']
    #allocation6 [shape = 's32[1]{0}', space=sflag, size = 0x4, scoped, tag = 'scoped memory for tpu_custom_call.1']
    #allocation7 [shape = 'u8[32768]{0}', space=vmem, size = 0x8000, scoped, tag = 'input window, operand 3, single buffered']
    #allocation8 [shape = 'u8[32768]{0}', space=vmem, size = 0x8000, scoped, tag = 'input window, operand 5, single buffered']
    #allocation9 [shape = 's32[1]{0}', space=sflag, size = 0x4, scoped, tag = 'scoped memory for tpu_custom_call.1']
    #allocation10 [shape = 'u8[8192]{0}', space=vmem, size = 0x2000, scoped, tag = 'output window, operand 0']
    %12 = vsyncpa [#allocation3], 0
    %s13 = scalar_lea.sflag [#allocation3], 1
    %14 = vsyncpa %s13, 0
    %15 = vsyncpa [#allocation6], 0
    %16 = vsyncpa [#allocation9], 0
    %17 = vsyncpa [#allocation4], 0
    %s18 = scalar_lea.sflag [#allocation4], 1
    %19 = vsyncpa %s18, 0
    loop: start=0, step=1, limit=4
    $region2: #{tpu_custom_call.1} parent=1 // loop_pre_header
      _
    $region3: #{tpu_custom_call.1} parent=1 // loop_header
      %s21 = sphi 0, %s25
      %p22 = scmp.ge.s32.totalorder %s21, 4
      %s31 = sphi 0, %s33
      %s34 = sphi 0, %s31
      %s35 = sphi 0, %s34
      %s51 = sphi 0, %s35
      %s55 = sphi 0, %s55
      %s57 = sphi 0, %s55
      %s58 = sphi 0, %s57
      %s72 = sphi 0, %s58
      %s76 = sphi 0, %s76
      %s78 = sphi 0, %s76
      %s79 = sphi 0, %s78
      %s93 = sphi 0, %s79
      %s97 = sphi 0, %s97
      %s99 = sphi 0, %s97
      %s100 = sphi 0, %s99
      %s114 = sphi 0, %s100
      %s118 = sphi 0, %s118
      %s120 = sphi 0, %s118
      %s121 = sphi 0, %s120
      %s135 = sphi 0, %s121
      %s139 = sphi 0, %s139
      %s141 = sphi 0, %s139
      %s142 = sphi 0, %s141
      %s156 = sphi 0, %s142
      %s160 = sphi 0, %s160
      %s162 = sphi 0, %s160
      %s163 = sphi 0, %s162
      %s177 = sphi 0, %s163
      %s183 = sphi 0, %s185
      %s186 = sphi 0, %s183
      %s187 = sphi 0, %s186
      %s203 = sphi 0, %s187
    $region4: #{tpu_custom_call.1} parent=1 // loop_header_branch
      %24 = sbr.rel (%p22) target = $region8
    $region5: #{tpu_custom_call.1} parent=1 // loop_body
      %s26 = ssub.s32 %s21, 1
      %s27 = ssub.s32 %s21, 2
      %s28 = sadd.s32 %s21, 1
      %s29 = ssub.s32 %s21, %s28
      %p30 = scmp.eq.s32.totalorder %s29, 0
      %s32 = sadd.s32 %s31, 1
      %s33 = scalar_select %p30, %s31, %s32
      %p36 = pneg %p30
      %p37 = scmp.eq.s32.totalorder %s21, 1
      %p38 = por %p36, %p37
      %p39 = scmp.ne.s32.totalorder %s31, %s34
      %p40 = scmp.eq.s32.totalorder %s21, 0
      %p41 = por %p39, %p40
      %p42 = scmp.ne.s32.totalorder %s31, %s34
      %p43 = scmp.eq.s32.totalorder %s26, 1
      %p44 = por %p42, %p43
      %p45 = scmp.ne.s32.totalorder %s34, %s35
      %p46 = scmp.eq.s32.totalorder %s26, 0
      %p47 = por %p45, %p46
      %p48 = scmp.ne.s32.totalorder %s34, %s35
      %p49 = scmp.eq.s32.totalorder %s27, 1
      %p50 = por %p48, %p49
      %p52 = scmp.ne.s32.totalorder %s35, %s51
      %p53 = scmp.eq.s32.totalorder %s27, 0
      %p54 = por %p52, %p53
      %s56 = sadd.s32 %s55, 1
      %p59 = scmp.eq.s32.totalorder %s21, 1
      %p60 = scmp.ne.s32.totalorder %s55, %s57
      %p61 = scmp.eq.s32.totalorder %s21, 0
      %p62 = por %p60, %p61
      %p63 = scmp.ne.s32.totalorder %s55, %s57
      %p64 = scmp.eq.s32.totalorder %s26, 1
      %p65 = por %p63, %p64
      %p66 = scmp.ne.s32.totalorder %s57, %s58
      %p67 = scmp.eq.s32.totalorder %s26, 0
      %p68 = por %p66, %p67
      %p69 = scmp.ne.s32.totalorder %s57, %s58
      %p70 = scmp.eq.s32.totalorder %s27, 1
      %p71 = por %p69, %p70
      %p73 = scmp.ne.s32.totalorder %s58, %s72
      %p74 = scmp.eq.s32.totalorder %s27, 0
      %p75 = por %p73, %p74
      %s77 = sadd.s32 %s76, 1
      %p80 = scmp.eq.s32.totalorder %s21, 1
      %p81 = scmp.ne.s32.totalorder %s76, %s78
      %p82 = scmp.eq.s32.totalorder %s21, 0
      %p83 = por %p81, %p82
      %p84 = scmp.ne.s32.totalorder %s76, %s78
      %p85 = scmp.eq.s32.totalorder %s26, 1
      %p86 = por %p84, %p85
      %p87 = scmp.ne.s32.totalorder %s78, %s79
      %p88 = scmp.eq.s32.totalorder %s26, 0
      %p89 = por %p87, %p88
      %p90 = scmp.ne.s32.totalorder %s78, %s79
      %p91 = scmp.eq.s32.totalorder %s27, 1
      %p92 = por %p90, %p91
      %p94 = scmp.ne.s32.totalorder %s79, %s93
      %p95 = scmp.eq.s32.totalorder %s27, 0
      %p96 = por %p94, %p95
      %s98 = sadd.s32 %s97, 1
      %p101 = scmp.eq.s32.totalorder %s21, 1
      %p102 = scmp.ne.s32.totalorder %s97, %s99
      %p103 = scmp.eq.s32.totalorder %s21, 0
      %p104 = por %p102, %p103
      %p105 = scmp.ne.s32.totalorder %s97, %s99
      %p106 = scmp.eq.s32.totalorder %s26, 1
      %p107 = por %p105, %p106
      %p108 = scmp.ne.s32.totalorder %s99, %s100
      %p109 = scmp.eq.s32.totalorder %s26, 0
      %p110 = por %p108, %p109
      %p111 = scmp.ne.s32.totalorder %s99, %s100
      %p112 = scmp.eq.s32.totalorder %s27, 1
      %p113 = por %p111, %p112
      %p115 = scmp.ne.s32.totalorder %s100, %s114
      %p116 = scmp.eq.s32.totalorder %s27, 0
      %p117 = por %p115, %p116
      %s119 = sadd.s32 %s118, 1
      %p122 = scmp.eq.s32.totalorder %s21, 1
      %p123 = scmp.ne.s32.totalorder %s118, %s120
      %p124 = scmp.eq.s32.totalorder %s21, 0
      %p125 = por %p123, %p124
      %p126 = scmp.ne.s32.totalorder %s118, %s120
      %p127 = scmp.eq.s32.totalorder %s26, 1
      %p128 = por %p126, %p127
      %p129 = scmp.ne.s32.totalorder %s120, %s121
      %p130 = scmp.eq.s32.totalorder %s26, 0
      %p131 = por %p129, %p130
      %p132 = scmp.ne.s32.totalorder %s120, %s121
      %p133 = scmp.eq.s32.totalorder %s27, 1
      %p134 = por %p132, %p133
      %p136 = scmp.ne.s32.totalorder %s121, %s135
      %p137 = scmp.eq.s32.totalorder %s27, 0
      %p138 = por %p136, %p137
      %s140 = sadd.s32 %s139, 1
      %p143 = scmp.eq.s32.totalorder %s21, 1
      %p144 = scmp.ne.s32.totalorder %s139, %s141
      %p145 = scmp.eq.s32.totalorder %s21, 0
      %p146 = por %p144, %p145
      %p147 = scmp.ne.s32.totalorder %s139, %s141
      %p148 = scmp.eq.s32.totalorder %s26, 1
      %p149 = por %p147, %p148
      %p150 = scmp.ne.s32.totalorder %s141, %s142
      %p151 = scmp.eq.s32.totalorder %s26, 0
      %p152 = por %p150, %p151
      %p153 = scmp.ne.s32.totalorder %s141, %s142
      %p154 = scmp.eq.s32.totalorder %s27, 1
      %p155 = por %p153, %p154
      %p157 = scmp.ne.s32.totalorder %s142, %s156
      %p158 = scmp.eq.s32.totalorder %s27, 0
      %p159 = por %p157, %p158
      %s161 = sadd.s32 %s160, 1
      %p164 = scmp.eq.s32.totalorder %s21, 1
      %p165 = scmp.ne.s32.totalorder %s160, %s162
      %p166 = scmp.eq.s32.totalorder %s21, 0
      %p167 = por %p165, %p166
      %p168 = scmp.ne.s32.totalorder %s160, %s162
      %p169 = scmp.eq.s32.totalorder %s26, 1
      %p170 = por %p168, %p169
      %p171 = scmp.ne.s32.totalorder %s162, %s163
      %p172 = scmp.eq.s32.totalorder %s26, 0
      %p173 = por %p171, %p172
      %p174 = scmp.ne.s32.totalorder %s162, %s163
      %p175 = scmp.eq.s32.totalorder %s27, 1
      %p176 = por %p174, %p175
      %p178 = scmp.ne.s32.totalorder %s163, %s177
      %p179 = scmp.eq.s32.totalorder %s27, 0
      %p180 = por %p178, %p179
      %s181 = ssub.s32 %s21, %s28
      %p182 = scmp.eq.s32.totalorder %s181, 0
      %s184 = sadd.s32 %s183, 1
      %s185 = scalar_select %p182, %s183, %s184
      %p188 = pneg %p182
      %p189 = scmp.eq.s32.totalorder %s21, 1
      %p190 = por %p188, %p189
      %p191 = scmp.ne.s32.totalorder %s183, %s186
      %p192 = scmp.eq.s32.totalorder %s21, 0
      %p193 = por %p191, %p192
      %p194 = scmp.ne.s32.totalorder %s183, %s186
      %p195 = scmp.eq.s32.totalorder %s26, 1
      %p196 = por %p194, %p195
      %p197 = scmp.ne.s32.totalorder %s186, %s187
      %p198 = scmp.eq.s32.totalorder %s26, 0
      %p199 = por %p197, %p198
      %p200 = scmp.ne.s32.totalorder %s186, %s187
      %p201 = scmp.eq.s32.totalorder %s27, 1
      %p202 = por %p200, %p201
      %p204 = scmp.ne.s32.totalorder %s187, %s203
      %p205 = scmp.eq.s32.totalorder %s27, 0
      %p206 = por %p204, %p205
      %p207 = scmp.le.s32.totalorder 1, %s21
      %p208 = scmp.lt.s32.totalorder %s21, 3
      %p209 = pnand %p207, %p208
      %p210 = pneg %p209
      // Predicated region
      $region9: #{tpu_custom_call.1} parent=5 // pred_check
        _
      $region10: #{tpu_custom_call.1} parent=5 // pred_check_branch
        %212 = sbr.rel (%p209) target = $region12
      $region11: #{tpu_custom_call.1} parent=5 // pred_region
        %s213 = ssub.s32 %s21, 1
        // Predicated region
        $region13: #{tpu_custom_call.1} parent=11 // pred_check
          %p214 = pneg %p68
        $region14: #{tpu_custom_call.1} parent=11 // pred_check_branch
          %216 = sbr.rel (%p214) target = $region16
        $region15: #{tpu_custom_call.1} parent=11 // pred_region
          %s218 = ssub.s32 128, 128
          %219 = vsyncadd [#allocation6], %s218
          %s220 = sshll.u32 [#allocation5], 4
          %s221 = int_to_ptr.vmem [resolvable:$true] %s220
          %226 = dma.hbm_to_vmem [thread:$0]  %s1, 128, %s221, [#allocation6], 64, 64, 4
        $region16: #{tpu_custom_call.1} parent=11 // pred_fallthru
          _
        // Predicated region
        $region17: #{tpu_custom_call.1} parent=11 // pred_check
          %p227 = pneg %p89
        $region18: #{tpu_custom_call.1} parent=11 // pred_check_branch
          %229 = sbr.rel (%p227) target = $region20
        $region19: #{tpu_custom_call.1} parent=11 // pred_region
          _
        $region20: #{tpu_custom_call.1} parent=11 // pred_fallthru
          _
        // Predicated region
        $region21: #{tpu_custom_call.1} parent=11 // pred_check
          %p230 = pneg %p110
        $region22: #{tpu_custom_call.1} parent=11 // pred_check_branch
          %232 = sbr.rel (%p230) target = $region24
        $region23: #{tpu_custom_call.1} parent=11 // pred_region
          %s234 = ssub.s32 1024, 1024
          %235 = vsyncadd [#allocation6], %s234
          %s236 = sshll.u32 [#allocation7], 4
          %s237 = int_to_ptr.vmem [resolvable:$true] %s236
          %242 = dma.hbm_to_vmem [thread:$0]  %s3, 1024, %s237, [#allocation6], 64, 64, 4
        $region24: #{tpu_custom_call.1} parent=11 // pred_fallthru
          _
        // Predicated region
        $region25: #{tpu_custom_call.1} parent=11 // pred_check
          %p243 = pneg %p131
        $region26: #{tpu_custom_call.1} parent=11 // pred_check_branch
          %245 = sbr.rel (%p243) target = $region28
        $region27: #{tpu_custom_call.1} parent=11 // pred_region
          _
        $region28: #{tpu_custom_call.1} parent=11 // pred_fallthru
          _
        // Predicated region
        $region29: #{tpu_custom_call.1} parent=11 // pred_check
          %p246 = pneg %p152
        $region30: #{tpu_custom_call.1} parent=11 // pred_check_branch
          %248 = sbr.rel (%p246) target = $region32
        $region31: #{tpu_custom_call.1} parent=11 // pred_region
          %s250 = ssub.s32 1024, 1024
          %251 = vsyncadd [#allocation9], %s250
          %s252 = sshll.u32 [#allocation8], 4
          %s253 = int_to_ptr.vmem [resolvable:$true] %s252
          %258 = dma.hbm_to_vmem [thread:$0]  %s5, 1024, %s253, [#allocation9], 64, 64, 4
        $region32: #{tpu_custom_call.1} parent=11 // pred_fallthru
          _
        // Predicated region
        $region33: #{tpu_custom_call.1} parent=11 // pred_check
          %p259 = pneg %p173
        $region34: #{tpu_custom_call.1} parent=11 // pred_check_branch
          %261 = sbr.rel (%p259) target = $region36
        $region35: #{tpu_custom_call.1} parent=11 // pred_region
          _
        $region36: #{tpu_custom_call.1} parent=11 // pred_fallthru
          _
      $region12: #{tpu_custom_call.1} parent=5 // pred_fallthru
        _
      %p262 = scmp.lt.s32.totalorder %s21, 2
      // Predicated region
      $region37: #{tpu_custom_call.1} parent=5 // pred_check
        %p263 = pneg %p262
      $region38: #{tpu_custom_call.1} parent=5 // pred_check_branch
        %265 = sbr.rel (%p263) target = $region40
      $region39: #{tpu_custom_call.1} parent=5 // pred_region
        // Predicated region
        $region41: #{tpu_custom_call.1} parent=39 // pred_check
          %p266 = pneg %p41
        $region42: #{tpu_custom_call.1} parent=39 // pred_check_branch
          %268 = sbr.rel (%p266) target = $region44
        $region43: #{tpu_custom_call.1} parent=39 // pred_region
          %s269 = sand.u32 %s31, 1
          %s270 = scalar_lea.sflag [#allocation3], %s269
          %s271 = sand.u32 %s31, 1
          %s272 = smul.addr %s271, 8
          %s273 = scalar_lea.vmem [#allocation2], %s272
          %s275 = ssub.s32 128, 128
          %276 = vsyncadd %s270, %s275
          %s277 = smul.addr %s21, 128
          %s278 = scalar_lea.hbm %s0, %s277
          %s280 = sshll.u32 %s273, 4
          %s281 = int_to_ptr.vmem [resolvable:$true] %s280
          %283 = dma.hbm_to_vmem [thread:$0]  %s278, 128, %s281, %s270
        $region44: #{tpu_custom_call.1} parent=39 // pred_fallthru
          _
      $region40: #{tpu_custom_call.1} parent=5 // pred_fallthru
        _
      %p284 = scmp.le.s32.totalorder 1, %s21
      %p285 = scmp.lt.s32.totalorder %s21, 3
      %p286 = pnand %p284, %p285
      %p287 = pneg %p286
      // Predicated region
      $region45: #{tpu_custom_call.1} parent=5 // pred_check
        _
      $region46: #{tpu_custom_call.1} parent=5 // pred_check_branch
        %289 = sbr.rel (%p286) target = $region48
      $region47: #{tpu_custom_call.1} parent=5 // pred_region
        %s290 = ssub.s32 %s21, 1
        %s291 = sand.u32 %s34, 1
        %s292 = scalar_lea.sflag [#allocation3], %s291
        %s293 = sand.u32 %s34, 1
        %s294 = smul.addr %s293, 8
        %s295 = scalar_lea.vmem [#allocation2], %s294
        // Predicated region
        $region49: #{tpu_custom_call.1} parent=47 // pred_check
          %p296 = pneg %p47
        $region50: #{tpu_custom_call.1} parent=47 // pred_check_branch
          %298 = sbr.rel (%p296) target = $region52
        $region51: #{tpu_custom_call.1} parent=47 // pred_region
          %299 = dma.done %s292, 128
        $region52: #{tpu_custom_call.1} parent=47 // pred_fallthru
          _
        // Predicated region
        $region53: #{tpu_custom_call.1} parent=47 // pred_check
          %p300 = pneg %p68
        $region54: #{tpu_custom_call.1} parent=47 // pred_check_branch
          %302 = sbr.rel (%p300) target = $region56
        $region55: #{tpu_custom_call.1} parent=47 // pred_region
          %303 = dma.done [#allocation6], 128
        $region56: #{tpu_custom_call.1} parent=47 // pred_fallthru
          _
        // Predicated region
        $region57: #{tpu_custom_call.1} parent=47 // pred_check
          %p304 = pneg %p110
        $region58: #{tpu_custom_call.1} parent=47 // pred_check_branch
          %306 = sbr.rel (%p304) target = $region60
        $region59: #{tpu_custom_call.1} parent=47 // pred_region
          %307 = dma.done [#allocation6], 1024
        $region60: #{tpu_custom_call.1} parent=47 // pred_fallthru
          _
        // Predicated region
        $region61: #{tpu_custom_call.1} parent=47 // pred_check
          %p308 = pneg %p152
        $region62: #{tpu_custom_call.1} parent=47 // pred_check_branch
          %310 = sbr.rel (%p308) target = $region64
        $region63: #{tpu_custom_call.1} parent=47 // pred_region
          %311 = dma.done [#allocation9], 1024
        $region64: #{tpu_custom_call.1} parent=47 // pred_fallthru
          _
        %s312 = sand.u32 %s34, 1
        %s313 = scalar_lea.sflag [#allocation3], %s312
        %s314 = sand.u32 %s34, 1
        %s315 = smul.addr %s314, 8
        %s316 = scalar_lea.vmem [#allocation2], %s315
        %p317 = pneg %p47
        %p318 = pneg %p44
        %p319 = pneg %p68
        %p320 = pneg %p65
        %p321 = pneg %p89
        %p322 = pneg %p86
        %p323 = pneg %p110
        %p324 = pneg %p107
        %p325 = pneg %p131
        %p326 = pneg %p128
        %p327 = pneg %p152
        %p328 = pneg %p149
        %p329 = pneg %p173
        %p330 = pneg %p170
        %p331 = pneg %p199
        %p332 = pneg %p196
        %s333 = sand.u32 %s186, 1
        %s334 = scalar_lea.sflag [#allocation4], %s333
        %s335 = sand.u32 %s186, 1
        %s336 = smul.addr %s335, 8
        %s337 = scalar_lea.vmem [#allocation10], %s336
        %v339 = vld [vmem:[%s295] sm:$0xff]
        %v340 = vpack.c.bf16 %v339, %v339
        %v341 = vld [vmem:[#allocation5] sm:$0xf]
        %v342 = vld [vmem:[#allocation5 + $0x4] sm:$0xf]
        %v343 = vld [vmem:[%s2] sm:$0x1]
        %v345 = vlaneseq
        %v346 = vshrl.u32 %v345, 7
        %v347 = vsub.s32 0, %v346
        %v348 = vrot.slane %v343, %v347
        %v352 = vunpack.c.l.b16 %v341
        %v353 = vunpack.c.l.b16 %v342
        %v354 = vpack.c.b16 %v353, %v352
        %vm356 = vcmask 130048
        %v358 = vsel %vm356, %v340, 0
        %360 = vmatprep.subr.bf16.mxu0 0
        %361 = vmatpush1.bf16.msra.mxu0 %v354
        %362 = vmatprep.subr.bf16.mxu0 0
        %363 = vmatpush1.bf16.msra.mxu0 0
        %364 = vmatprep.subr.bf16.mxu0 0
        %365 = vmatpush1.bf16.msra.mxu0 0
        %366 = vmatprep.subr.bf16.mxu0 0
        %367 = vmatpush1.bf16.msra.mxu0 0
        %368 = vmatprep.subr.bf16.mxu0 0
        %369 = vmatpush1.bf16.msra.mxu0 0
        %370 = vmatprep.subr.bf16.mxu0 0
        %371 = vmatpush1.bf16.msra.mxu0 0
        %372 = vmatprep.subr.bf16.mxu0 0
        %373 = vmatpush1.bf16.msra.mxu0 0
        %374 = vmatprep.subr.bf16.mxu0 0
        %375 = vmatpush1.bf16.msra.mxu0 0
        %376 = vmatprep.subr.bf16.mxu0 0
        %377 = vmatpush1.bf16.msra.mxu0 0
        %378 = vmatprep.subr.bf16.mxu0 0
        %379 = vmatpush1.bf16.msra.mxu0 0
        %380 = vmatprep.subr.bf16.mxu0 0
        %381 = vmatpush1.bf16.msra.mxu0 0
        %382 = vmatprep.subr.bf16.mxu0 0
        %383 = vmatpush1.bf16.msra.mxu0 0
        %384 = vmatprep.subr.bf16.mxu0 0
        %385 = vmatpush1.bf16.msra.mxu0 0
        %386 = vmatprep.subr.bf16.mxu0 0
        %387 = vmatpush1.bf16.msra.mxu0 0
        %388 = vmatprep.subr.bf16.mxu0 0
        %389 = vmatpush1.bf16.msra.mxu0 0
        %390 = vmatprep.subr.bf16.mxu0 0
        %391 = vmatpush1.bf16.msra.mxu0 0
        %392 = vmatprep.mubr.bf16.mxu0 0
        %393 = vmatmul.mubr.bf16.gmra.mrb[0].mxu0 %v358
        %v394 = vpop.f32.mrb[0].mxu0
        %v395 = vadd.f32 %v348, %v394
        %v396 = vpop.f32.mrb[0].mxu0
        %v397 = vpop.f32.mrb[0].mxu0
        %v398 = vpop.f32.mrb[0].mxu0
        %399 = vdwg.mxu0
        %v400 = vmul.f32 %v395, 0.2
        %v401 = vmax.f32 %v395, %v400
        %v402 = vpack.c.bf16 %v401, %v401
        %v403 = vld [vmem:[#allocation7] sm:$0xf]
        %v404 = vld [vmem:[#allocation7 + $0x4] sm:$0xf]
        %v405 = vld [vmem:[#allocation7 + $0x8] sm:$0xf]
        %v406 = vld [vmem:[#allocation7 + $0xc] sm:$0xf]
        %v407 = vld [vmem:[#allocation7 + $0x10] sm:$0xf]
        %v408 = vld [vmem:[#allocation7 + $0x14] sm:$0xf]
        %v409 = vld [vmem:[#allocation7 + $0x18] sm:$0xf]
        %v410 = vld [vmem:[#allocation7 + $0x1c] sm:$0xf]
        %v411 = vld [vmem:[#allocation7 + $0x20] sm:$0xf]
        %v412 = vld [vmem:[#allocation7 + $0x24] sm:$0xf]
        %v413 = vld [vmem:[#allocation7 + $0x28] sm:$0xf]
        %v414 = vld [vmem:[#allocation7 + $0x2c] sm:$0xf]
        %v415 = vld [vmem:[#allocation7 + $0x30] sm:$0xf]
        %v416 = vld [vmem:[#allocation7 + $0x34] sm:$0xf]
        %v417 = vld [vmem:[#allocation7 + $0x38] sm:$0xf]
        %v418 = vld [vmem:[#allocation7 + $0x3c] sm:$0xf]
        %v419 = vld [vmem:[%s4] sm:$0x1]
        %v421 = vlaneseq
        %v422 = vshrl.u32 %v421, 7
        %v423 = vsub.s32 0, %v422
        %v424 = vrot.slane %v419, %v423
        %v442 = vunpack.c.l.b16 %v403
        %v443 = vunpack.c.l.b16 %v404
        %v444 = vunpack.c.l.b16 %v405
        %v445 = vunpack.c.l.b16 %v406
        %v446 = vunpack.c.l.b16 %v407
        %v447 = vunpack.c.l.b16 %v408
        %v448 = vunpack.c.l.b16 %v409
        %v449 = vunpack.c.l.b16 %v410
        %v450 = vunpack.c.l.b16 %v411
        %v451 = vunpack.c.l.b16 %v412
        %v452 = vunpack.c.l.b16 %v413
        %v453 = vunpack.c.l.b16 %v414
        %v454 = vunpack.c.l.b16 %v415
        %v455 = vunpack.c.l.b16 %v416
        %v456 = vunpack.c.l.b16 %v417
        %v457 = vunpack.c.l.b16 %v418
        %v458 = vpack.c.b16 %v443, %v442
        %v459 = vpack.c.b16 %v445, %v444
        %v460 = vpack.c.b16 %v447, %v446
        %v461 = vpack.c.b16 %v449, %v448
        %v462 = vpack.c.b16 %v451, %v450
        %v463 = vpack.c.b16 %v453, %v452
        %v464 = vpack.c.b16 %v455, %v454
        %v465 = vpack.c.b16 %v457, %v456
        %474 = vmatprep.subr.bf16.mxu0 0
        %475 = vmatpush1.bf16.msra.mxu0 %v458
        %476 = vmatprep.subr.bf16.mxu0 0
        %477 = vmatpush1.bf16.msra.mxu0 %v459
        %478 = vmatprep.subr.bf16.mxu0 0
        %479 = vmatpush1.bf16.msra.mxu0 %v460
        %480 = vmatprep.subr.bf16.mxu0 0
        %481 = vmatpush1.bf16.msra.mxu0 %v461
        %482 = vmatprep.subr.bf16.mxu0 0
        %483 = vmatpush1.bf16.msra.mxu0 %v462
        %484 = vmatprep.subr.bf16.mxu0 0
        %485 = vmatpush1.bf16.msra.mxu0 %v463
        %486 = vmatprep.subr.bf16.mxu0 0
        %487 = vmatpush1.bf16.msra.mxu0 %v464
        %488 = vmatprep.subr.bf16.mxu0 0
        %489 = vmatpush1.bf16.msra.mxu0 %v465
        %490 = vmatprep.subr.bf16.mxu0 0
        %491 = vmatpush1.bf16.msra.mxu0 0
        %492 = vmatprep.subr.bf16.mxu0 0
        %493 = vmatpush1.bf16.msra.mxu0 0
        %494 = vmatprep.subr.bf16.mxu0 0
        %495 = vmatpush1.bf16.msra.mxu0 0
        %496 = vmatprep.subr.bf16.mxu0 0
        %497 = vmatpush1.bf16.msra.mxu0 0
        %498 = vmatprep.subr.bf16.mxu0 0
        %499 = vmatpush1.bf16.msra.mxu0 0
        %500 = vmatprep.subr.bf16.mxu0 0
        %501 = vmatpush1.bf16.msra.mxu0 0
        %502 = vmatprep.subr.bf16.mxu0 0
        %503 = vmatpush1.bf16.msra.mxu0 0
        %504 = vmatprep.subr.bf16.mxu0 0
        %505 = vmatpush1.bf16.msra.mxu0 0
        %506 = vmatprep.mubr.bf16.mxu0 0
        %507 = vmatmul.mubr.bf16.gmra.mrb[0].mxu0 %v402
        %v508 = vpop.f32.mrb[0].mxu0
        %v509 = vadd.f32 %v424, %v508
        %v510 = vpop.f32.mrb[0].mxu0
        %v511 = vpop.f32.mrb[0].mxu0
        %v512 = vpop.f32.mrb[0].mxu0
        %513 = vdwg.mxu0
        %v514 = vmul.f32 %v509, 0.2
        %v515 = vmax.f32 %v509, %v514
        %v516 = vpack.c.bf16 %v515, %v515
        %v517 = vld [vmem:[#allocation8] sm:$0xf]
        %v518 = vld [vmem:[#allocation8 + $0x4] sm:$0xf]
        %v519 = vld [vmem:[#allocation8 + $0x8] sm:$0xf]
        %v520 = vld [vmem:[#allocation8 + $0xc] sm:$0xf]
        %v521 = vld [vmem:[#allocation8 + $0x10] sm:$0xf]
        %v522 = vld [vmem:[#allocation8 + $0x14] sm:$0xf]
        %v523 = vld [vmem:[#allocation8 + $0x18] sm:$0xf]
        %v524 = vld [vmem:[#allocation8 + $0x1c] sm:$0xf]
        %v525 = vld [vmem:[#allocation8 + $0x20] sm:$0xf]
        %v526 = vld [vmem:[#allocation8 + $0x24] sm:$0xf]
        %v527 = vld [vmem:[#allocation8 + $0x28] sm:$0xf]
        %v528 = vld [vmem:[#allocation8 + $0x2c] sm:$0xf]
        %v529 = vld [vmem:[#allocation8 + $0x30] sm:$0xf]
        %v530 = vld [vmem:[#allocation8 + $0x34] sm:$0xf]
        %v531 = vld [vmem:[#allocation8 + $0x38] sm:$0xf]
        %v532 = vld [vmem:[#allocation8 + $0x3c] sm:$0xf]
        %v533 = vld [vmem:[%s6] sm:$0x1]
        %v535 = vlaneseq
        %v536 = vshrl.u32 %v535, 7
        %v537 = vsub.s32 0, %v536
        %v538 = vrot.slane %v533, %v537
        %v556 = vunpack.c.l.b16 %v517
        %v557 = vunpack.c.l.b16 %v518
        %v558 = vunpack.c.l.b16 %v519
        %v559 = vunpack.c.l.b16 %v520
        %v560 = vunpack.c.l.b16 %v521
        %v561 = vunpack.c.l.b16 %v522
        %v562 = vunpack.c.l.b16 %v523
        %v563 = vunpack.c.l.b16 %v524
        %v564 = vunpack.c.l.b16 %v525
        %v565 = vunpack.c.l.b16 %v526
        %v566 = vunpack.c.l.b16 %v527
        %v567 = vunpack.c.l.b16 %v528
        %v568 = vunpack.c.l.b16 %v529
        %v569 = vunpack.c.l.b16 %v530
        %v570 = vunpack.c.l.b16 %v531
        %v571 = vunpack.c.l.b16 %v532
        %v572 = vpack.c.b16 %v557, %v556
        %v573 = vpack.c.b16 %v559, %v558
        %v574 = vpack.c.b16 %v561, %v560
        %v575 = vpack.c.b16 %v563, %v562
        %v576 = vpack.c.b16 %v565, %v564
        %v577 = vpack.c.b16 %v567, %v566
        %v578 = vpack.c.b16 %v569, %v568
        %v579 = vpack.c.b16 %v571, %v570
        %588 = vmatprep.subr.bf16.mxu0 0
        %589 = vmatpush1.bf16.msra.mxu0 %v572
        %590 = vmatprep.subr.bf16.mxu0 0
        %591 = vmatpush1.bf16.msra.mxu0 %v573
        %592 = vmatprep.subr.bf16.mxu0 0
        %593 = vmatpush1.bf16.msra.mxu0 %v574
        %594 = vmatprep.subr.bf16.mxu0 0
        %595 = vmatpush1.bf16.msra.mxu0 %v575
        %596 = vmatprep.subr.bf16.mxu0 0
        %597 = vmatpush1.bf16.msra.mxu0 %v576
        %598 = vmatprep.subr.bf16.mxu0 0
        %599 = vmatpush1.bf16.msra.mxu0 %v577
        %600 = vmatprep.subr.bf16.mxu0 0
        %601 = vmatpush1.bf16.msra.mxu0 %v578
        %602 = vmatprep.subr.bf16.mxu0 0
        %603 = vmatpush1.bf16.msra.mxu0 %v579
        %604 = vmatprep.subr.bf16.mxu0 0
        %605 = vmatpush1.bf16.msra.mxu0 0
        %606 = vmatprep.subr.bf16.mxu0 0
        %607 = vmatpush1.bf16.msra.mxu0 0
        %608 = vmatprep.subr.bf16.mxu0 0
        %609 = vmatpush1.bf16.msra.mxu0 0
        %610 = vmatprep.subr.bf16.mxu0 0
        %611 = vmatpush1.bf16.msra.mxu0 0
        %612 = vmatprep.subr.bf16.mxu0 0
        %613 = vmatpush1.bf16.msra.mxu0 0
        %614 = vmatprep.subr.bf16.mxu0 0
        %615 = vmatpush1.bf16.msra.mxu0 0
        %616 = vmatprep.subr.bf16.mxu0 0
        %617 = vmatpush1.bf16.msra.mxu0 0
        %618 = vmatprep.subr.bf16.mxu0 0
        %619 = vmatpush1.bf16.msra.mxu0 0
        %620 = vmatprep.mubr.bf16.mxu0 0
        %621 = vmatmul.mubr.bf16.gmra.mrb[0].mxu0 %v516
        %v622 = vpop.f32.mrb[0].mxu0
        %v623 = vadd.f32 %v538, %v622
        %v624 = vpop.f32.mrb[0].mxu0
        %v625 = vpop.f32.mrb[0].mxu0
        %v626 = vpop.f32.mrb[0].mxu0
        %627 = vdwg.mxu0
        %v628 = vsub.f32 0.0, %v623
        %v629 = vmul.f32 %v628, 1.442695
        %v630 = vpow.pop %v629
        %v631 = vadd.f32 %v630, 1.0
        %v632 = vrcp.pop %v631
        %633 = vst [vmem:[%s337] sm:$0xff] %v632
        %s634 = sand.u32 %s186, 1
        %s635 = scalar_lea.sflag [#allocation4], %s634
        %s636 = sand.u32 %s186, 1
        %s637 = smul.addr %s636, 8
        %s638 = scalar_lea.vmem [#allocation10], %s637
        // Predicated region
        $region65: #{tpu_custom_call.1} parent=47 // pred_check
          %p639 = pneg %p196
        $region66: #{tpu_custom_call.1} parent=47 // pred_check_branch
          %641 = sbr.rel (%p639) target = $region68
        $region67: #{tpu_custom_call.1} parent=47 // pred_region
          %s643 = ssub.s32 128, 128
          %644 = vsyncadd %s635, %s643
          %s645 = smul.addr %s26, 128
          %s646 = scalar_lea.hbm %s7, %s645
          %s648 = sshll.u32 %s638, 4
          %s649 = int_to_ptr.vmem [resolvable:$true] %s648
          %651 = dma.vmem_to_hbm [thread:$0]  %s649, 128, %s646, %s635
        $region68: #{tpu_custom_call.1} parent=47 // pred_fallthru
          _
      $region48: #{tpu_custom_call.1} parent=5 // pred_fallthru
        _
      %p652 = scmp.le.s32.totalorder 2, %s21
      // Predicated region
      $region69: #{tpu_custom_call.1} parent=5 // pred_check
        %p653 = pneg %p652
      $region70: #{tpu_custom_call.1} parent=5 // pred_check_branch
        %655 = sbr.rel (%p653) target = $region72
      $region71: #{tpu_custom_call.1} parent=5 // pred_region
        %s656 = ssub.s32 %s21, 2
        // Predicated region
        $region73: #{tpu_custom_call.1} parent=71 // pred_check
          %p657 = pneg %p202
        $region74: #{tpu_custom_call.1} parent=71 // pred_check_branch
          %659 = sbr.rel (%p657) target = $region76
        $region75: #{tpu_custom_call.1} parent=71 // pred_region
          %s660 = sand.u32 %s187, 1
          %s661 = scalar_lea.sflag [#allocation4], %s660
          %s662 = sand.u32 %s187, 1
          %s663 = smul.addr %s662, 8
          %s664 = scalar_lea.vmem [#allocation10], %s663
          %665 = dma.done %s661, 128
        $region76: #{tpu_custom_call.1} parent=71 // pred_fallthru
          _
      $region72: #{tpu_custom_call.1} parent=5 // pred_fallthru
        _
    $region6: #{tpu_custom_call.1} parent=1 // loop_footer
      %s25 = sadd.s32 1, %s21
    $region7: #{tpu_custom_call.1} parent=1 // loop_footer_branch
      %20 = sbr.rel target = $region3
    $region8: #{tpu_custom_call.1} parent=1 // loop_exit
      _
    %666 = vsyncpa [#allocation3], 1
    %s667 = scalar_lea.sflag [#allocation3], 1
    %668 = vsyncpa %s667, 1
    %669 = vsyncpa [#allocation6], 1
    %670 = vsyncpa [#allocation9], 1
    %671 = vsyncpa [#allocation4], 1
    %s672 = scalar_lea.sflag [#allocation4], 1
    %673 = vsyncpa %s672, 1

// kernel: tpu_custom_call.1
$region0: #{tpu_custom_call.1}
  #allocation0 [shape = 'u32[]', space=smem, size = 0x4, offset = 0x4, fixed_abs, tag = 'smem constant byte address 0x4 - core index']
  #allocation1 [shape = 'u32[144,128]{1,0:T(1,128)}', space=vmem, size = 0x12000, scoped, tag = 'internal scratch']
  %s0 = inlined_call_operand.hbm [shape: f32[16,16], index: 0, kind: input, shape index: {}]
  %s1 = inlined_call_operand.hbm [shape: bf16[16,128], index: 1, kind: input, shape index: {}]
  %s2 = inlined_call_operand.vmem [shape: f32[1,128], index: 2, kind: input, shape index: {}]
  %s3 = inlined_call_operand.hbm [shape: bf16[128,128], index: 3, kind: input, shape index: {}]
  %s4 = inlined_call_operand.vmem [shape: f32[1,128], index: 4, kind: input, shape index: {}]
  %s5 = inlined_call_operand.hbm [shape: bf16[128,128], index: 5, kind: input, shape index: {}]
  %s6 = inlined_call_operand.vmem [shape: f32[1,128], index: 6, kind: input, shape index: {}]
  %s7 = inlined_call_operand.hbm [shape: f32[16,128], index: 7, kind: output, shape index: {}]
  %s8 = sld [smem:[#allocation0]]
  $region77: #{tpu_custom_call.1} parent=0
    _
  %s10 = ssub.s32 1, %s8
  %s11 = scalar_select 0, %s10, %s8
  $region1: #{tpu_custom_call.1} parent=0
    #allocation2 [shape = 'u8[8192]{0}', space=vmem, size = 0x2000, scoped, tag = 'input window, operand 0']
    #allocation3 [shape = 's32[2]{0}', space=sflag, size = 0x8, scoped, tag = 'scoped memory for tpu_custom_call.1']
    #allocation4 [shape = 's32[2]{0}', space=sflag, size = 0x8, scoped, tag = 'scoped memory for tpu_custom_call.1']
    #allocation5 [shape = 'u8[4096]{0}', space=vmem, size = 0x1000, scoped, tag = 'input window, operand 1, single buffered']
    #allocation6 [shape = 's32[1]{0}', space=sflag, size = 0x4, scoped, tag = 'scoped memory for tpu_custom_call.1']
    #allocation7 [shape = 'u8[32768]{0}', space=vmem, size = 0x8000, scoped, tag = 'input window, operand 3, single buffered']
    #allocation8 [shape = 'u8[32768]{0}', space=vmem, size = 0x8000, scoped, tag = 'input window, operand 5, single buffered']
    #allocation9 [shape = 's32[1]{0}', space=sflag, size = 0x4, scoped, tag = 'scoped memory for tpu_custom_call.1']
    #allocation10 [shape = 'u8[8192]{0}', space=vmem, size = 0x2000, scoped, tag = 'output window, operand 0']
    %12 = vsyncpa [#allocation3], 0
    %s13 = scalar_lea.sflag [#allocation3], 1
    %14 = vsyncpa %s13, 0
    %15 = vsyncpa [#allocation6], 0
    %16 = vsyncpa [#allocation9], 0
    %17 = vsyncpa [#allocation4], 0
    %s18 = scalar_lea.sflag [#allocation4], 1
    %19 = vsyncpa %s18, 0
    loop: start=0, step=1, limit=4
    $region2: #{tpu_custom_call.1} parent=1 // loop_pre_header
      _
    $region3: #{tpu_custom_call.1} parent=1 // loop_header
      %s21 = sphi 0, %s25
      %p22 = scmp.ge.s32.totalorder %s21, 4
      %s31 = sphi 0, %s33
      %s34 = sphi 0, %s31
      %s35 = sphi 0, %s34
      %s51 = sphi 0, %s35
      %s55 = sphi 0, %s55
      %s57 = sphi 0, %s55
      %s58 = sphi 0, %s57
      %s72 = sphi 0, %s58
      %s76 = sphi 0, %s76
      %s78 = sphi 0, %s76
      %s79 = sphi 0, %s78
      %s93 = sphi 0, %s79
      %s97 = sphi 0, %s97
      %s99 = sphi 0, %s97
      %s100 = sphi 0, %s99
      %s114 = sphi 0, %s100
      %s118 = sphi 0, %s118
      %s120 = sphi 0, %s118
      %s121 = sphi 0, %s120
      %s135 = sphi 0, %s121
      %s139 = sphi 0, %s139
      %s141 = sphi 0, %s139
      %s142 = sphi 0, %s141
      %s156 = sphi 0, %s142
      %s160 = sphi 0, %s160
      %s162 = sphi 0, %s160
      %s163 = sphi 0, %s162
      %s177 = sphi 0, %s163
      %s183 = sphi 0, %s185
      %s186 = sphi 0, %s183
      %s187 = sphi 0, %s186
      %s203 = sphi 0, %s187
    $region4: #{tpu_custom_call.1} parent=1 // loop_header_branch
      %24 = sbr.rel (%p22) target = $region8
    $region5: #{tpu_custom_call.1} parent=1 // loop_body
      %s26 = ssub.s32 %s21, 1
      %s27 = ssub.s32 %s21, 2
      %s28 = sadd.s32 %s21, 1
      %s29 = ssub.s32 %s21, %s28
      %p30 = scmp.eq.s32.totalorder %s29, 0
      %s32 = sadd.s32 %s31, 1
      %s33 = scalar_select %p30, %s31, %s32
      %p36 = pneg %p30
      %p37 = scmp.eq.s32.totalorder %s21, 1
      %p38 = por %p36, %p37
      %p39 = scmp.ne.s32.totalorder %s31, %s34
      %p40 = scmp.eq.s32.totalorder %s21, 0
      %p41 = por %p39, %p40
      %p42 = scmp.ne.s32.totalorder %s31, %s34
      %p43 = scmp.eq.s32.totalorder %s26, 1
      %p44 = por %p42, %p43
      %p45 = scmp.ne.s32.totalorder %s34, %s35
      %p46 = scmp.eq.s32.totalorder %s26, 0
      %p47 = por %p45, %p46
      %p48 = scmp.ne.s32.totalorder %s34, %s35
      %p49 = scmp.eq.s32.totalorder %s27, 1
      %p50 = por %p48, %p49
      %p52 = scmp.ne.s32.totalorder %s35, %s51
      %p53 = scmp.eq.s32.totalorder %s27, 0
      %p54 = por %p52, %p53
      %s56 = sadd.s32 %s55, 1
      %p59 = scmp.eq.s32.totalorder %s21, 1
      %p60 = scmp.ne.s32.totalorder %s55, %s57
      %p61 = scmp.eq.s32.totalorder %s21, 0
      %p62 = por %p60, %p61
      %p63 = scmp.ne.s32.totalorder %s55, %s57
      %p64 = scmp.eq.s32.totalorder %s26, 1
      %p65 = por %p63, %p64
      %p66 = scmp.ne.s32.totalorder %s57, %s58
      %p67 = scmp.eq.s32.totalorder %s26, 0
      %p68 = por %p66, %p67
      %p69 = scmp.ne.s32.totalorder %s57, %s58
      %p70 = scmp.eq.s32.totalorder %s27, 1
      %p71 = por %p69, %p70
      %p73 = scmp.ne.s32.totalorder %s58, %s72
      %p74 = scmp.eq.s32.totalorder %s27, 0
      %p75 = por %p73, %p74
      %s77 = sadd.s32 %s76, 1
      %p80 = scmp.eq.s32.totalorder %s21, 1
      %p81 = scmp.ne.s32.totalorder %s76, %s78
      %p82 = scmp.eq.s32.totalorder %s21, 0
      %p83 = por %p81, %p82
      %p84 = scmp.ne.s32.totalorder %s76, %s78
      %p85 = scmp.eq.s32.totalorder %s26, 1
      %p86 = por %p84, %p85
      %p87 = scmp.ne.s32.totalorder %s78, %s79
      %p88 = scmp.eq.s32.totalorder %s26, 0
      %p89 = por %p87, %p88
      %p90 = scmp.ne.s32.totalorder %s78, %s79
      %p91 = scmp.eq.s32.totalorder %s27, 1
      %p92 = por %p90, %p91
      %p94 = scmp.ne.s32.totalorder %s79, %s93
      %p95 = scmp.eq.s32.totalorder %s27, 0
      %p96 = por %p94, %p95
      %s98 = sadd.s32 %s97, 1
      %p101 = scmp.eq.s32.totalorder %s21, 1
      %p102 = scmp.ne.s32.totalorder %s97, %s99
      %p103 = scmp.eq.s32.totalorder %s21, 0
      %p104 = por %p102, %p103
      %p105 = scmp.ne.s32.totalorder %s97, %s99
      %p106 = scmp.eq.s32.totalorder %s26, 1
      %p107 = por %p105, %p106
      %p108 = scmp.ne.s32.totalorder %s99, %s100
      %p109 = scmp.eq.s32.totalorder %s26, 0
      %p110 = por %p108, %p109
      %p111 = scmp.ne.s32.totalorder %s99, %s100
      %p112 = scmp.eq.s32.totalorder %s27, 1
      %p113 = por %p111, %p112
      %p115 = scmp.ne.s32.totalorder %s100, %s114
      %p116 = scmp.eq.s32.totalorder %s27, 0
      %p117 = por %p115, %p116
      %s119 = sadd.s32 %s118, 1
      %p122 = scmp.eq.s32.totalorder %s21, 1
      %p123 = scmp.ne.s32.totalorder %s118, %s120
      %p124 = scmp.eq.s32.totalorder %s21, 0
      %p125 = por %p123, %p124
      %p126 = scmp.ne.s32.totalorder %s118, %s120
      %p127 = scmp.eq.s32.totalorder %s26, 1
      %p128 = por %p126, %p127
      %p129 = scmp.ne.s32.totalorder %s120, %s121
      %p130 = scmp.eq.s32.totalorder %s26, 0
      %p131 = por %p129, %p130
      %p132 = scmp.ne.s32.totalorder %s120, %s121
      %p133 = scmp.eq.s32.totalorder %s27, 1
      %p134 = por %p132, %p133
      %p136 = scmp.ne.s32.totalorder %s121, %s135
      %p137 = scmp.eq.s32.totalorder %s27, 0
      %p138 = por %p136, %p137
      %s140 = sadd.s32 %s139, 1
      %p143 = scmp.eq.s32.totalorder %s21, 1
      %p144 = scmp.ne.s32.totalorder %s139, %s141
      %p145 = scmp.eq.s32.totalorder %s21, 0
      %p146 = por %p144, %p145
      %p147 = scmp.ne.s32.totalorder %s139, %s141
      %p148 = scmp.eq.s32.totalorder %s26, 1
      %p149 = por %p147, %p148
      %p150 = scmp.ne.s32.totalorder %s141, %s142
      %p151 = scmp.eq.s32.totalorder %s26, 0
      %p152 = por %p150, %p151
      %p153 = scmp.ne.s32.totalorder %s141, %s142
      %p154 = scmp.eq.s32.totalorder %s27, 1
      %p155 = por %p153, %p154
      %p157 = scmp.ne.s32.totalorder %s142, %s156
      %p158 = scmp.eq.s32.totalorder %s27, 0
      %p159 = por %p157, %p158
      %s161 = sadd.s32 %s160, 1
      %p164 = scmp.eq.s32.totalorder %s21, 1
      %p165 = scmp.ne.s32.totalorder %s160, %s162
      %p166 = scmp.eq.s32.totalorder %s21, 0
      %p167 = por %p165, %p166
      %p168 = scmp.ne.s32.totalorder %s160, %s162
      %p169 = scmp.eq.s32.totalorder %s26, 1
      %p170 = por %p168, %p169
      %p171 = scmp.ne.s32.totalorder %s162, %s163
      %p172 = scmp.eq.s32.totalorder %s26, 0
      %p173 = por %p171, %p172
      %p174 = scmp.ne.s32.totalorder %s162, %s163
      %p175 = scmp.eq.s32.totalorder %s27, 1
      %p176 = por %p174, %p175
      %p178 = scmp.ne.s32.totalorder %s163, %s177
      %p179 = scmp.eq.s32.totalorder %s27, 0
      %p180 = por %p178, %p179
      %s181 = ssub.s32 %s21, %s28
      %p182 = scmp.eq.s32.totalorder %s181, 0
      %s184 = sadd.s32 %s183, 1
      %s185 = scalar_select %p182, %s183, %s184
      %p188 = pneg %p182
      %p189 = scmp.eq.s32.totalorder %s21, 1
      %p190 = por %p188, %p189
      %p191 = scmp.ne.s32.totalorder %s183, %s186
      %p192 = scmp.eq.s32.totalorder %s21, 0
      %p193 = por %p191, %p192
      %p194 = scmp.ne.s32.totalorder %s183, %s186
      %p195 = scmp.eq.s32.totalorder %s26, 1
      %p196 = por %p194, %p195
      %p197 = scmp.ne.s32.totalorder %s186, %s187
      %p198 = scmp.eq.s32.totalorder %s26, 0
      %p199 = por %p197, %p198
      %p200 = scmp.ne.s32.totalorder %s186, %s187
      %p201 = scmp.eq.s32.totalorder %s27, 1
      %p202 = por %p200, %p201
      %p204 = scmp.ne.s32.totalorder %s187, %s203
      %p205 = scmp.eq.s32.totalorder %s27, 0
      %p206 = por %p204, %p205
      %p207 = scmp.le.s32.totalorder 1, %s21
      %p208 = scmp.lt.s32.totalorder %s21, 3
      %p209 = pnand %p207, %p208
      %p210 = pneg %p209
      // Predicated region
      $region9: #{tpu_custom_call.1} parent=5 // pred_check
        _
      $region10: #{tpu_custom_call.1} parent=5 // pred_check_branch
        %212 = sbr.rel (%p209) target = $region12
      $region11: #{tpu_custom_call.1} parent=5 // pred_region
        %s213 = ssub.s32 %s21, 1
        // Predicated region
        $region13: #{tpu_custom_call.1} parent=11 // pred_check
          %p214 = pneg %p68
        $region14: #{tpu_custom_call.1} parent=11 // pred_check_branch
          %216 = sbr.rel (%p214) target = $region16
        $region15: #{tpu_custom_call.1} parent=11 // pred_region
          %s218 = ssub.s32 128, 128
          %219 = vsyncadd [#allocation6], %s218
          %s220 = sshll.u32 [#allocation5], 4
          %s221 = int_to_ptr.vmem [resolvable:$true] %s220
          %226 = dma.hbm_to_vmem [thread:$0]  %s1, 128, %s221, [#allocation6], 64, 64, 4
        $region16: #{tpu_custom_call.1} parent=11 // pred_fallthru
          _
        // Predicated region
        $region17: #{tpu_custom_call.1} parent=11 // pred_check
          %p227 = pneg %p89
        $region18: #{tpu_custom_call.1} parent=11 // pred_check_branch
          %229 = sbr.rel (%p227) target = $region20
        $region19: #{tpu_custom_call.1} parent=11 // pred_region
          _
        $region20: #{tpu_custom_call.1} parent=11 // pred_fallthru
          _
        // Predicated region
        $region21: #{tpu_custom_call.1} parent=11 // pred_check
          %p230 = pneg %p110
        $region22: #{tpu_custom_call.1} parent=11 // pred_check_branch
          %232 = sbr.rel (%p230) target = $region24
        $region23: #{tpu_custom_call.1} parent=11 // pred_region
          %s234 = ssub.s32 1024, 1024
          %235 = vsyncadd [#allocation6], %s234
          %s236 = sshll.u32 [#allocation7], 4
          %s237 = int_to_ptr.vmem [resolvable:$true] %s236
          %242 = dma.hbm_to_vmem [thread:$0]  %s3, 1024, %s237, [#allocation6], 64, 64, 4
        $region24: #{tpu_custom_call.1} parent=11 // pred_fallthru
          _
        // Predicated region
        $region25: #{tpu_custom_call.1} parent=11 // pred_check
          %p243 = pneg %p131
        $region26: #{tpu_custom_call.1} parent=11 // pred_check_branch
          %245 = sbr.rel (%p243) target = $region28
        $region27: #{tpu_custom_call.1} parent=11 // pred_region
          _
        $region28: #{tpu_custom_call.1} parent=11 // pred_fallthru
          _
        // Predicated region
        $region29: #{tpu_custom_call.1} parent=11 // pred_check
          %p246 = pneg %p152
        $region30: #{tpu_custom_call.1} parent=11 // pred_check_branch
          %248 = sbr.rel (%p246) target = $region32
        $region31: #{tpu_custom_call.1} parent=11 // pred_region
          %s250 = ssub.s32 1024, 1024
          %251 = vsyncadd [#allocation9], %s250
          %s252 = sshll.u32 [#allocation8], 4
          %s253 = int_to_ptr.vmem [resolvable:$true] %s252
          %258 = dma.hbm_to_vmem [thread:$0]  %s5, 1024, %s253, [#allocation9], 64, 64, 4
        $region32: #{tpu_custom_call.1} parent=11 // pred_fallthru
          _
        // Predicated region
        $region33: #{tpu_custom_call.1} parent=11 // pred_check
          %p259 = pneg %p173
        $region34: #{tpu_custom_call.1} parent=11 // pred_check_branch
          %261 = sbr.rel (%p259) target = $region36
        $region35: #{tpu_custom_call.1} parent=11 // pred_region
          _
        $region36: #{tpu_custom_call.1} parent=11 // pred_fallthru
          _
      $region12: #{tpu_custom_call.1} parent=5 // pred_fallthru
        _
      %p262 = scmp.lt.s32.totalorder %s21, 2
      // Predicated region
      $region37: #{tpu_custom_call.1} parent=5 // pred_check
        %p263 = pneg %p262
      $region38: #{tpu_custom_call.1} parent=5 // pred_check_branch
        %265 = sbr.rel (%p263) target = $region40
      $region39: #{tpu_custom_call.1} parent=5 // pred_region
        // Predicated region
        $region41: #{tpu_custom_call.1} parent=39 // pred_check
          %p266 = pneg %p41
        $region42: #{tpu_custom_call.1} parent=39 // pred_check_branch
          %268 = sbr.rel (%p266) target = $region44
        $region43: #{tpu_custom_call.1} parent=39 // pred_region
          %s269 = sand.u32 %s31, 1
          %s270 = scalar_lea.sflag [#allocation3], %s269
          %s271 = sand.u32 %s31, 1
          %s272 = smul.addr %s271, 8
          %s273 = scalar_lea.vmem [#allocation2], %s272
          %s275 = ssub.s32 128, 128
          %276 = vsyncadd %s270, %s275
          %s277 = smul.addr %s21, 128
          %s278 = scalar_lea.hbm %s0, %s277
          %s280 = sshll.u32 %s273, 4
          %s281 = int_to_ptr.vmem [resolvable:$true] %s280
          %283 = dma.hbm_to_vmem [thread:$0]  %s278, 128, %s281, %s270
        $region44: #{tpu_custom_call.1} parent=39 // pred_fallthru
          _
      $region40: #{tpu_custom_call.1} parent=5 // pred_fallthru
        _
      %p284 = scmp.le.s32.totalorder 1, %s21
      %p285 = scmp.lt.s32.totalorder %s21, 3
      %p286 = pnand %p284, %p285
      %p287 = pneg %p286
      // Predicated region
      $region45: #{tpu_custom_call.1} parent=5 // pred_check
        _
      $region46: #{tpu_custom_call.1} parent=5 // pred_check_branch
        %289 = sbr.rel (%p286) target = $region48
      $region47: #{tpu_custom_call.1} parent=5 // pred_region
        %s290 = ssub.s32 %s21, 1
        %s291 = sand.u32 %s34, 1
        %s292 = scalar_lea.sflag [#allocation3], %s291
        %s293 = sand.u32 %s34, 1
        %s294 = smul.addr %s293, 8
        %s295 = scalar_lea.vmem [#allocation2], %s294
        // Predicated region
        $region49: #{tpu_custom_call.1} parent=47 // pred_check
          %p296 = pneg %p47
        $region50: #{tpu_custom_call.1} parent=47 // pred_check_branch
          %298 = sbr.rel (%p296) target = $region52
        $region51: #{tpu_custom_call.1} parent=47 // pred_region
          %299 = dma.done %s292, 128
        $region52: #{tpu_custom_call.1} parent=47 // pred_fallthru
          _
        // Predicated region
        $region53: #{tpu_custom_call.1} parent=47 // pred_check
          %p300 = pneg %p68
        $region54: #{tpu_custom_call.1} parent=47 // pred_check_branch
          %302 = sbr.rel (%p300) target = $region56
        $region55: #{tpu_custom_call.1} parent=47 // pred_region
          %303 = dma.done [#allocation6], 128
        $region56: #{tpu_custom_call.1} parent=47 // pred_fallthru
          _
        // Predicated region
        $region57: #{tpu_custom_call.1} parent=47 // pred_check
          %p304 = pneg %p110
        $region58: #{tpu_custom_call.1} parent=47 // pred_check_branch
          %306 = sbr.rel (%p304) target = $region60
        $region59: #{tpu_custom_call.1} parent=47 // pred_region
          %307 = dma.done [#allocation6], 1024
        $region60: #{tpu_custom_call.1} parent=47 // pred_fallthru
          _
        // Predicated region
        $region61: #{tpu_custom_call.1} parent=47 // pred_check
          %p308 = pneg %p152
        $region62: #{tpu_custom_call.1} parent=47 // pred_check_branch
          %310 = sbr.rel (%p308) target = $region64
        $region63: #{tpu_custom_call.1} parent=47 // pred_region
          %311 = dma.done [#allocation9], 1024
        $region64: #{tpu_custom_call.1} parent=47 // pred_fallthru
          _
        %s312 = sand.u32 %s34, 1
        %s313 = scalar_lea.sflag [#allocation3], %s312
        %s314 = sand.u32 %s34, 1
        %s315 = smul.addr %s314, 8
        %s316 = scalar_lea.vmem [#allocation2], %s315
        %p317 = pneg %p47
        %p318 = pneg %p44
        %p319 = pneg %p68
        %p320 = pneg %p65
        %p321 = pneg %p89
        %p322 = pneg %p86
        %p323 = pneg %p110
        %p324 = pneg %p107
        %p325 = pneg %p131
        %p326 = pneg %p128
        %p327 = pneg %p152
        %p328 = pneg %p149
        %p329 = pneg %p173
        %p330 = pneg %p170
        %p331 = pneg %p199
        %p332 = pneg %p196
        %s333 = sand.u32 %s186, 1
        %s334 = scalar_lea.sflag [#allocation4], %s333
        %s335 = sand.u32 %s186, 1
        %s336 = smul.addr %s335, 8
        %s337 = scalar_lea.vmem [#allocation10], %s336
        %v339 = vld [vmem:[%s295] sm:$0xff]
        %v340 = vpack.c.bf16 %v339, %v339
        %v341 = vld [vmem:[#allocation5] sm:$0xf]
        %v342 = vld [vmem:[#allocation5 + $0x4] sm:$0xf]
        %v343 = vld [vmem:[%s2] sm:$0x1]
        %v345 = vlaneseq
        %v346 = vshrl.u32 %v345, 7
        %v347 = vsub.s32 0, %v346
        %v348 = vrot.slane %v343, %v347
        %v352 = vunpack.c.l.b16 %v341
        %v353 = vunpack.c.l.b16 %v342
        %v354 = vpack.c.b16 %v353, %v352
        %vm356 = vcmask 130048
        %v358 = vsel %vm356, %v340, 0
        %360 = vmatprep.subr.bf16.mxu0 0
        %361 = vmatpush1.bf16.msra.mxu0 %v354
        %362 = vmatprep.subr.bf16.mxu0 0
        %363 = vmatpush1.bf16.msra.mxu0 0
        %364 = vmatprep.subr.bf16.mxu0 0
        %365 = vmatpush1.bf16.msra.mxu0 0
        %366 = vmatprep.subr.bf16.mxu0 0
        %367 = vmatpush1.bf16.msra.mxu0 0
        %368 = vmatprep.subr.bf16.mxu0 0
        %369 = vmatpush1.bf16.msra.mxu0 0
        %370 = vmatprep.subr.bf16.mxu0 0
        %371 = vmatpush1.bf16.msra.mxu0 0
        %372 = vmatprep.subr.bf16.mxu0 0
        %373 = vmatpush1.bf16.msra.mxu0 0
        %374 = vmatprep.subr.bf16.mxu0 0
        %375 = vmatpush1.bf16.msra.mxu0 0
        %376 = vmatprep.subr.bf16.mxu0 0
        %377 = vmatpush1.bf16.msra.mxu0 0
        %378 = vmatprep.subr.bf16.mxu0 0
        %379 = vmatpush1.bf16.msra.mxu0 0
        %380 = vmatprep.subr.bf16.mxu0 0
        %381 = vmatpush1.bf16.msra.mxu0 0
        %382 = vmatprep.subr.bf16.mxu0 0
        %383 = vmatpush1.bf16.msra.mxu0 0
        %384 = vmatprep.subr.bf16.mxu0 0
        %385 = vmatpush1.bf16.msra.mxu0 0
        %386 = vmatprep.subr.bf16.mxu0 0
        %387 = vmatpush1.bf16.msra.mxu0 0
        %388 = vmatprep.subr.bf16.mxu0 0
        %389 = vmatpush1.bf16.msra.mxu0 0
        %390 = vmatprep.subr.bf16.mxu0 0
        %391 = vmatpush1.bf16.msra.mxu0 0
        %392 = vmatprep.mubr.bf16.mxu0 0
        %393 = vmatmul.mubr.bf16.gmra.mrb[0].mxu0 %v358
        %v394 = vpop.f32.mrb[0].mxu0
        %v395 = vadd.f32 %v348, %v394
        %v396 = vpop.f32.mrb[0].mxu0
        %v397 = vpop.f32.mrb[0].mxu0
        %v398 = vpop.f32.mrb[0].mxu0
        %399 = vdwg.mxu0
        %v400 = vmul.f32 %v395, 0.2
        %v401 = vmax.f32 %v395, %v400
        %v402 = vpack.c.bf16 %v401, %v401
        %v403 = vld [vmem:[#allocation7] sm:$0xf]
        %v404 = vld [vmem:[#allocation7 + $0x4] sm:$0xf]
        %v405 = vld [vmem:[#allocation7 + $0x8] sm:$0xf]
        %v406 = vld [vmem:[#allocation7 + $0xc] sm:$0xf]
        %v407 = vld [vmem:[#allocation7 + $0x10] sm:$0xf]
        %v408 = vld [vmem:[#allocation7 + $0x14] sm:$0xf]
        %v409 = vld [vmem:[#allocation7 + $0x18] sm:$0xf]
        %v410 = vld [vmem:[#allocation7 + $0x1c] sm:$0xf]
        %v411 = vld [vmem:[#allocation7 + $0x20] sm:$0xf]
        %v412 = vld [vmem:[#allocation7 + $0x24] sm:$0xf]
        %v413 = vld [vmem:[#allocation7 + $0x28] sm:$0xf]
        %v414 = vld [vmem:[#allocation7 + $0x2c] sm:$0xf]
        %v415 = vld [vmem:[#allocation7 + $0x30] sm:$0xf]
        %v416 = vld [vmem:[#allocation7 + $0x34] sm:$0xf]
        %v417 = vld [vmem:[#allocation7 + $0x38] sm:$0xf]
        %v418 = vld [vmem:[#allocation7 + $0x3c] sm:$0xf]
        %v419 = vld [vmem:[%s4] sm:$0x1]
        %v421 = vlaneseq
        %v422 = vshrl.u32 %v421, 7
        %v423 = vsub.s32 0, %v422
        %v424 = vrot.slane %v419, %v423
        %v442 = vunpack.c.l.b16 %v403
        %v443 = vunpack.c.l.b16 %v404
        %v444 = vunpack.c.l.b16 %v405
        %v445 = vunpack.c.l.b16 %v406
        %v446 = vunpack.c.l.b16 %v407
        %v447 = vunpack.c.l.b16 %v408
        %v448 = vunpack.c.l.b16 %v409
        %v449 = vunpack.c.l.b16 %v410
        %v450 = vunpack.c.l.b16 %v411
        %v451 = vunpack.c.l.b16 %v412
        %v452 = vunpack.c.l.b16 %v413
        %v453 = vunpack.c.l.b16 %v414
        %v454 = vunpack.c.l.b16 %v415
        %v455 = vunpack.c.l.b16 %v416
        %v456 = vunpack.c.l.b16 %v417
        %v457 = vunpack.c.l.b16 %v418
        %v458 = vpack.c.b16 %v443, %v442
        %v459 = vpack.c.b16 %v445, %v444
        %v460 = vpack.c.b16 %v447, %v446
        %v461 = vpack.c.b16 %v449, %v448
        %v462 = vpack.c.b16 %v451, %v450
        %v463 = vpack.c.b16 %v453, %v452
        %v464 = vpack.c.b16 %v455, %v454
        %v465 = vpack.c.b16 %v457, %v456
        %474 = vmatprep.subr.bf16.mxu0 0
        %475 = vmatpush1.bf16.msra.mxu0 %v458
        %476 = vmatprep.subr.bf16.mxu0 0
        %477 = vmatpush1.bf16.msra.mxu0 %v459
        %478 = vmatprep.subr.bf16.mxu0 0
        %479 = vmatpush1.bf16.msra.mxu0 %v460
        %480 = vmatprep.subr.bf16.mxu0 0
        %481 = vmatpush1.bf16.msra.mxu0 %v461
        %482 = vmatprep.subr.bf16.mxu0 0
        %483 = vmatpush1.bf16.msra.mxu0 %v462
        %484 = vmatprep.subr.bf16.mxu0 0
        %485 = vmatpush1.bf16.msra.mxu0 %v463
        %486 = vmatprep.subr.bf16.mxu0 0
        %487 = vmatpush1.bf16.msra.mxu0 %v464
        %488 = vmatprep.subr.bf16.mxu0 0
        %489 = vmatpush1.bf16.msra.mxu0 %v465
        %490 = vmatprep.subr.bf16.mxu0 0
        %491 = vmatpush1.bf16.msra.mxu0 0
        %492 = vmatprep.subr.bf16.mxu0 0
        %493 = vmatpush1.bf16.msra.mxu0 0
        %494 = vmatprep.subr.bf16.mxu0 0
        %495 = vmatpush1.bf16.msra.mxu0 0
        %496 = vmatprep.subr.bf16.mxu0 0
        %497 = vmatpush1.bf16.msra.mxu0 0
        %498 = vmatprep.subr.bf16.mxu0 0
        %499 = vmatpush1.bf16.msra.mxu0 0
        %500 = vmatprep.subr.bf16.mxu0 0
        %501 = vmatpush1.bf16.msra.mxu0 0
        %502 = vmatprep.subr.bf16.mxu0 0
        %503 = vmatpush1.bf16.msra.mxu0 0
        %504 = vmatprep.subr.bf16.mxu0 0
        %505 = vmatpush1.bf16.msra.mxu0 0
        %506 = vmatprep.mubr.bf16.mxu0 0
        %507 = vmatmul.mubr.bf16.gmra.mrb[0].mxu0 %v402
        %v508 = vpop.f32.mrb[0].mxu0
        %v509 = vadd.f32 %v424, %v508
        %v510 = vpop.f32.mrb[0].mxu0
        %v511 = vpop.f32.mrb[0].mxu0
        %v512 = vpop.f32.mrb[0].mxu0
        %513 = vdwg.mxu0
        %v514 = vmul.f32 %v509, 0.2
        %v515 = vmax.f32 %v509, %v514
        %v516 = vpack.c.bf16 %v515, %v515
        %v517 = vld [vmem:[#allocation8] sm:$0xf]
        %v518 = vld [vmem:[#allocation8 + $0x4] sm:$0xf]
        %v519 = vld [vmem:[#allocation8 + $0x8] sm:$0xf]
        %v520 = vld [vmem:[#allocation8 + $0xc] sm:$0xf]
        %v521 = vld [vmem:[#allocation8 + $0x10] sm:$0xf]
        %v522 = vld [vmem:[#allocation8 + $0x14] sm:$0xf]
        %v523 = vld [vmem:[#allocation8 + $0x18] sm:$0xf]
        %v524 = vld [vmem:[#allocation8 + $0x1c] sm:$0xf]
        %v525 = vld [vmem:[#allocation8 + $0x20] sm:$0xf]
        %v526 = vld [vmem:[#allocation8 + $0x24] sm:$0xf]
        %v527 = vld [vmem:[#allocation8 + $0x28] sm:$0xf]
        %v528 = vld [vmem:[#allocation8 + $0x2c] sm:$0xf]
        %v529 = vld [vmem:[#allocation8 + $0x30] sm:$0xf]
        %v530 = vld [vmem:[#allocation8 + $0x34] sm:$0xf]
        %v531 = vld [vmem:[#allocation8 + $0x38] sm:$0xf]
        %v532 = vld [vmem:[#allocation8 + $0x3c] sm:$0xf]
        %v533 = vld [vmem:[%s6] sm:$0x1]
        %v535 = vlaneseq
        %v536 = vshrl.u32 %v535, 7
        %v537 = vsub.s32 0, %v536
        %v538 = vrot.slane %v533, %v537
        %v556 = vunpack.c.l.b16 %v517
        %v557 = vunpack.c.l.b16 %v518
        %v558 = vunpack.c.l.b16 %v519
        %v559 = vunpack.c.l.b16 %v520
        %v560 = vunpack.c.l.b16 %v521
        %v561 = vunpack.c.l.b16 %v522
        %v562 = vunpack.c.l.b16 %v523
        %v563 = vunpack.c.l.b16 %v524
        %v564 = vunpack.c.l.b16 %v525
        %v565 = vunpack.c.l.b16 %v526
        %v566 = vunpack.c.l.b16 %v527
        %v567 = vunpack.c.l.b16 %v528
        %v568 = vunpack.c.l.b16 %v529
        %v569 = vunpack.c.l.b16 %v530
        %v570 = vunpack.c.l.b16 %v531
        %v571 = vunpack.c.l.b16 %v532
        %v572 = vpack.c.b16 %v557, %v556
        %v573 = vpack.c.b16 %v559, %v558
        %v574 = vpack.c.b16 %v561, %v560
        %v575 = vpack.c.b16 %v563, %v562
        %v576 = vpack.c.b16 %v565, %v564
        %v577 = vpack.c.b16 %v567, %v566
        %v578 = vpack.c.b16 %v569, %v568
        %v579 = vpack.c.b16 %v571, %v570
        %588 = vmatprep.subr.bf16.mxu0 0
        %589 = vmatpush1.bf16.msra.mxu0 %v572
        %590 = vmatprep.subr.bf16.mxu0 0
        %591 = vmatpush1.bf16.msra.mxu0 %v573
        %592 = vmatprep.subr.bf16.mxu0 0
        %593 = vmatpush1.bf16.msra.mxu0 %v574
        %594 = vmatprep.subr.bf16.mxu0 0
        %595 = vmatpush1.bf16.msra.mxu0 %v575
        %596 = vmatprep.subr.bf16.mxu0 0
        %597 = vmatpush1.bf16.msra.mxu0 %v576
        %598 = vmatprep.subr.bf16.mxu0 0
        %599 = vmatpush1.bf16.msra.mxu0 %v577
        %600 = vmatprep.subr.bf16.mxu0 0
        %601 = vmatpush1.bf16.msra.mxu0 %v578
        %602 = vmatprep.subr.bf16.mxu0 0
        %603 = vmatpush1.bf16.msra.mxu0 %v579
        %604 = vmatprep.subr.bf16.mxu0 0
        %605 = vmatpush1.bf16.msra.mxu0 0
        %606 = vmatprep.subr.bf16.mxu0 0
        %607 = vmatpush1.bf16.msra.mxu0 0
        %608 = vmatprep.subr.bf16.mxu0 0
        %609 = vmatpush1.bf16.msra.mxu0 0
        %610 = vmatprep.subr.bf16.mxu0 0
        %611 = vmatpush1.bf16.msra.mxu0 0
        %612 = vmatprep.subr.bf16.mxu0 0
        %613 = vmatpush1.bf16.msra.mxu0 0
        %614 = vmatprep.subr.bf16.mxu0 0
        %615 = vmatpush1.bf16.msra.mxu0 0
        %616 = vmatprep.subr.bf16.mxu0 0
        %617 = vmatpush1.bf16.msra.mxu0 0
        %618 = vmatprep.subr.bf16.mxu0 0
        %619 = vmatpush1.bf16.msra.mxu0 0
        %620 = vmatprep.mubr.bf16.mxu0 0
        %621 = vmatmul.mubr.bf16.gmra.mrb[0].mxu0 %v516
        %v622 = vpop.f32.mrb[0].mxu0
        %v623 = vadd.f32 %v538, %v622
        %v624 = vpop.f32.mrb[0].mxu0
        %v625 = vpop.f32.mrb[0].mxu0
        %v626 = vpop.f32.mrb[0].mxu0
        %627 = vdwg.mxu0
        %v628 = vsub.f32 0.0, %v623
        %v629 = vmul.f32 %v628, 1.442695
        %v630 = vpow.pop %v629
        %v631 = vadd.f32 %v630, 1.0
        %v632 = vrcp.pop %v631
        %633 = vst [vmem:[%s337] sm:$0xff] %v632
        %s634 = sand.u32 %s186, 1
        %s635 = scalar_lea.sflag [#allocation4], %s634
        %s636 = sand.u32 %s186, 1
        %s637 = smul.addr %s636, 8
        %s638 = scalar_lea.vmem [#allocation10], %s637
        // Predicated region
        $region65: #{tpu_custom_call.1} parent=47 // pred_check
          %p639 = pneg %p196
        $region66: #{tpu_custom_call.1} parent=47 // pred_check_branch
          %641 = sbr.rel (%p639) target = $region68
        $region67: #{tpu_custom_call.1} parent=47 // pred_region
          %s643 = ssub.s32 128, 128
          %644 = vsyncadd %s635, %s643
          %s645 = smul.addr %s26, 128
          %s646 = scalar_lea.hbm %s7, %s645
          %s648 = sshll.u32 %s638, 4
          %s649 = int_to_ptr.vmem [resolvable:$true] %s648
          %651 = dma.vmem_to_hbm [thread:$0]  %s649, 128, %s646, %s635
        $region68: #{tpu_custom_call.1} parent=47 // pred_fallthru
          _
      $region48: #{tpu_custom_call.1} parent=5 // pred_fallthru
        _
      %p652 = scmp.le.s32.totalorder 2, %s21
      // Predicated region
      $region69: #{tpu_custom_call.1} parent=5 // pred_check
        %p653 = pneg %p652
      $region70: #{tpu_custom_call.1} parent=5 // pred_check_branch
        %655 = sbr.rel (%p653) target = $region72
      $region71: #{tpu_custom_call.1} parent=5 // pred_region
        %s656 = ssub.s32 %s21, 2
        // Predicated region
        $region73: #{tpu_custom_call.1} parent=71 // pred_check
          %p657 = pneg %p202
        $region74: #{tpu_custom_call.1} parent=71 // pred_check_branch
          %659 = sbr.rel (%p657) target = $region76
        $region75: #{tpu_custom_call.1} parent=71 // pred_region
          %s660 = sand.u32 %s187, 1
          %s661 = scalar_lea.sflag [#allocation4], %s660
          %s662 = sand.u32 %s187, 1
          %s663 = smul.addr %s662, 8
          %s664 = scalar_lea.vmem [#allocation10], %s663
          %665 = dma.done %s661, 128
        $region76: #{tpu_custom_call.1} parent=71 // pred_fallthru
          _
      $region72: #{tpu_custom_call.1} parent=5 // pred_fallthru
        _
    $region6: #{tpu_custom_call.1} parent=1 // loop_footer
      %s25 = sadd.s32 1, %s21
    $region7: #{tpu_custom_call.1} parent=1 // loop_footer_branch
      %20 = sbr.rel target = $region3
    $region8: #{tpu_custom_call.1} parent=1 // loop_exit
      _
    %666 = vsyncpa [#allocation3], 1
    %s667 = scalar_lea.sflag [#allocation3], 1
    %668 = vsyncpa %s667, 1
    %669 = vsyncpa [#allocation6], 1
    %670 = vsyncpa [#allocation9], 1
    %671 = vsyncpa [#allocation4], 1
    %s672 = scalar_lea.sflag [#allocation4], 1
    %673 = vsyncpa %s672, 1

</llo_original>
